<compile_context>
chip_gen: v5e
topology: v5e:2x2
jax: 0.10.0
libtpu: 0.0.40
codegen_flags: <defaults>
</compile_context>

<pallas_src>
import functools

import jax
import jax.numpy as jnp
from jax.experimental import pallas as pl
from jax.experimental.pallas import tpu as pltpu


def _round_up(n, m):
    return ((n + m - 1) // m) * m


def _pad2(a, rows, cols):
    return jnp.pad(a, ((0, rows - a.shape[0]), (0, cols - a.shape[1])))


# --------------------------------------------------------------------------- #
# Kernel
# --------------------------------------------------------------------------- #
def decoder_kernel(x_ref,
                   w1_ref, b1_ref,
                   w2_ref, b2_ref,
                   w3_ref, b3_ref,
                   w4_ref, b4_ref,
                   o_ref):
    """Fused 4-layer MLP on one batch tile.

    Weights/biases are whole-array VMEM blocks (constant index_map), so the
    pipeline keeps them resident across grid steps.  Every dot accumulates in
    f32 on the MXU; bias-add + ReLU run in f32 on the VPU; activations are cast
    back to the weight dtype *immediately after* the ReLU so that spills of the
    (tm, 256)/(tm, 512) intermediates happen at operand width.
    """
    w_dtype = w1_ref.dtype
    x = x_ref[...].astype(w_dtype)          # cheap in-kernel cast; wrapper stays cast-free

    h = jnp.dot(x, w1_ref[...], preferred_element_type=jnp.float32)
    h = jnp.maximum(h + b1_ref[...], 0.0).astype(w_dtype)

    h = jnp.dot(h, w2_ref[...], preferred_element_type=jnp.float32)
    h = jnp.maximum(h + b2_ref[...], 0.0).astype(w_dtype)

    h = jnp.dot(h, w3_ref[...], preferred_element_type=jnp.float32)
    h = jnp.maximum(h + b3_ref[...], 0.0).astype(w_dtype)

    h = jnp.dot(h, w4_ref[...], preferred_element_type=jnp.float32) + b4_ref[...]
    o_ref[...] = h.astype(o_ref.dtype)


# --------------------------------------------------------------------------- #
# One-time parameter preparation (NOT part of the per-call path)
# --------------------------------------------------------------------------- #
def prepare_decoder_params(params, use_bf16=True):
    """Pad + cast ONCE; call at init time, not per forward.

    * Zero-pads every feature width to a multiple of 128 (100->128, 200->256,
      400->512, 64->128) so each matmul N/K maps to clean MXU tiles and the
      output store is lane-dense (unmasked vst).  Zero weight columns feed
      zeros forward and ReLU(0)=0, so results are exact after slicing.
    * Optionally casts weights to bf16.  bf16 operands are the right choice on
      all generations (v5e's MXU is native bf16; f32 matmul is multi-pass);
      accumulation / bias / ReLU stay f32.  Note the input x is also consumed
      at bf16 precision inside the kernel in that mode.

    Returns (padded_param_dict, d_out).
    """
    w1, b1 = params["w1"], params["b1"]
    w2, b2 = params["w2"], params["b2"]
    w3, b3 = params["w3"], params["b3"]
    w4, b4 = params["w4"], params["b4"]
    d_in, d_out = w1.shape[0], w4.shape[1]

    h1p = _round_up(w1.shape[1], 128)   # 100 -> 128
    h2p = _round_up(w2.shape[1], 128)   # 200 -> 256
    h3p = _round_up(w3.shape[1], 128)   # 400 -> 512
    dop = _round_up(d_out, 128)         # 64  -> 128 (lane-dense output)

    wdt = jnp.bfloat16 if use_bf16 else jnp.float32
    padded = {
        "w1": _pad2(w1, d_in, h1p).astype(wdt), "b1": _pad2(b1, 1, h1p).astype(jnp.float32),
        "w2": _pad2(w2, h1p, h2p).astype(wdt), "b2": _pad2(b2, 1, h2p).astype(jnp.float32),
        "w3": _pad2(w3, h2p, h3p).astype(wdt), "b3": _pad2(b3, 1, h3p).astype(jnp.float32),
        "w4": _pad2(w4, h3p, dop).astype(wdt), "b4": _pad2(b4, 1, dop).astype(jnp.float32),
    }
    return padded, d_out


def _xla_mlp(x, p):
    """Fused XLA dot chain on the (padded) params -- used for tiny batches."""
    dt = p["w1"].dtype
    h = jnp.dot(x.astype(dt), p["w1"], preferred_element_type=jnp.float32) + p["b1"]
    h = jnp.maximum(h, 0.0).astype(dt)
    h = jnp.dot(h, p["w2"], preferred_element_type=jnp.float32) + p["b2"]
    h = jnp.maximum(h, 0.0).astype(dt)
    h = jnp.dot(h, p["w3"], preferred_element_type=jnp.float32) + p["b3"]
    h = jnp.maximum(h, 0.0).astype(dt)
    return jnp.dot(h, p["w4"], preferred_element_type=jnp.float32) + p["b4"]


# --------------------------------------------------------------------------- #
# Forward
# --------------------------------------------------------------------------- #
@functools.partial(jax.jit,
                   static_argnames=("d_out", "batch_tile", "min_pallas_batch"))
def decoder_forward(x, padded_params, d_out=None, batch_tile=1024,
                    min_pallas_batch=64):
    """x: (B, d_in) float32.  padded_params: output of prepare_decoder_params.

    d_out: if given (static), the lane padding is sliced off so the result is
      (B, d_out) like the PyTorch module.  Pass None to receive the lane-padded
      (B, 128) result and fuse the trim into the consumer (saves an HBM pass).
    """
    p = padded_params
    B, d_in = x.shape
    dop = p["w4"].shape[1]

    if B < min_pallas_batch:
        # Tiny batch: one grid step of a few MFLOP is pure launch/DMA latency;
        # a fused XLA dot chain is as fast or faster.
        out = _xla_mlp(x, p)
    else:
        # Big tiles amortize the ~0.35us per-grid-step overhead, but cap tm at
        # ceil(B/2) so there are >= 2 "parallel" steps for v7x's 2 TensorCores.
        tm = min(_round_up(batch_tile, 8), _round_up(B, 8))
        if B > 8:
            tm = min(tm, _round_up(pl.cdiv(B, 2), 8))
        grid = (pl.cdiv(B, tm),)

        def whole(shape):
            # Whole-array block with constant index -> stays VMEM-resident
            # across grid steps (padded weights total ~1 MiB, trivially fits).
            return pl.BlockSpec(shape, lambda i: (0, 0))

        out = pl.pallas_call(
            decoder_kernel,
            out_shape=jax.ShapeDtypeStruct((B, dop), jnp.float32),
            grid_spec=pltpu.PrefetchScalarGridSpec(
                num_scalar_prefetch=0,
                grid=grid,
                in_specs=[
                    pl.BlockSpec((tm, d_in), lambda i: (i, 0)),
                    whole(p["w1"].shape), whole(p["b1"].shape),
                    whole(p["w2"].shape), whole(p["b2"].shape),
                    whole(p["w3"].shape), whole(p["b3"].shape),
                    whole(p["w4"].shape), whole(p["b4"].shape),
                ],
                out_specs=pl.BlockSpec((tm, dop), lambda i: (i, 0)),
            ),
            compiler_params=pltpu.CompilerParams(
                dimension_semantics=("parallel",),
                # Real footprint is a few MiB; 32 MiB leaves headroom even on
                # v7x (64 MiB physical VMEM) while raising the 16 MiB v5e
                # default enough for tm up to ~2K rows.
                vmem_limit_bytes=32 << 20),
        )(x, p["w1"], p["b1"], p["w2"], p["b2"],
          p["w3"], p["b3"], p["w4"], p["b4"])

    if d_out is not None and d_out != dop:
        out = out[:, :d_out]
    return out


# --------------------------------------------------------------------------- #
# Init + pure-JAX reference (matches the PyTorch forward)
# --------------------------------------------------------------------------- #
def init_decoder_params(key, input_shape, output_shape):
    """PyTorch nn.Linear-style U(-1/sqrt(fan_in), 1/sqrt(fan_in)) init.
    Weights stored transposed (in, out), biases as (1, out)."""
    dims = [(input_shape, 100), (100, 200), (200, 400), (400, output_shape)]
    params = {}
    for idx, (fan_in, fan_out) in enumerate(dims, start=1):
        key, kw, kb = jax.random.split(key, 3)
        bound = 1.0 / jnp.sqrt(float(fan_in))
        params[f"w{idx}"] = jax.random.uniform(
            kw, (fan_in, fan_out), jnp.float32, minval=-bound, maxval=bound)
        params[f"b{idx}"] = jax.random.uniform(
            kb, (1, fan_out), jnp.float32, minval=-bound, maxval=bound)
    return params


def decoder_reference(x, params):
    h = jnp.maximum(x @ params["w1"] + params["b1"], 0.0)
    h = jnp.maximum(h @ params["w2"] + params["b2"], 0.0)
    h = jnp.maximum(h @ params["w3"] + params["b3"], 0.0)
    return h @ params["w4"] + params["b4"]


if __name__ == "__main__":
    input_shape = 32    # Decoder(input_shape=32, output_shape=64)
    output_shape = 64

    key = jax.random.PRNGKey(0)
    key, kx, kx_small = jax.random.split(key, 3)
    params = init_decoder_params(key, input_shape, output_shape)

    # One-time preparation (pad + cast) -- outside the per-call path.
    prep_f32, d_out = prepare_decoder_params(params, use_bf16=False)
    prep_bf16, _ = prepare_decoder_params(params, use_bf16=True)

    # ---- Pallas path: batch large enough for >= 2 parallel grid steps ----
    B = 256
    x = jax.random.normal(kx, (B, input_shape), jnp.float32)
    ref = decoder_reference(x, params)

    out_f32 = jax.block_until_ready(decoder_forward(x, prep_f32, d_out=d_out))
    assert out_f32.shape == (B, output_shape)
    assert jnp.allclose(out_f32, ref, atol=1e-4, rtol=1e-4), "f32 mismatch"

    out_bf16 = jax.block_until_ready(decoder_forward(x, prep_bf16, d_out=d_out))
    assert out_bf16.shape == (B, output_shape)
    assert jnp.all(jnp.isfinite(out_bf16))
    assert jnp.allclose(out_bf16, ref, atol=1e-1, rtol=1e-1), "bf16 mismatch"

    # ---- Tiny batch: routed to the fused XLA dot chain (no Pallas launch) ----
    x_small = jax.random.normal(kx_small, (16, input_shape), jnp.float32)
    out_small = jax.block_until_ready(decoder_forward(x_small, prep_f32, d_out=d_out))
    assert out_small.shape == (16, output_shape)
    assert jnp.allclose(out_small, decoder_reference(x_small, params),
                        atol=1e-4, rtol=1e-4), "small-batch mismatch"

    print("KERNEL_OK")
</pallas_src>

<mosaic_0001>
module attributes {stable_mosaic.version = 11 : i64} {
  func.func @decoder_kernel(%arg0: i32, %arg1: memref<128x32xf32, #tpu.memory_space<vmem>>, %arg2: memref<32x128xf32, #tpu.memory_space<vmem>>, %arg3: memref<1x128xf32, #tpu.memory_space<vmem>>, %arg4: memref<128x256xf32, #tpu.memory_space<vmem>>, %arg5: memref<1x256xf32, #tpu.memory_space<vmem>>, %arg6: memref<256x512xf32, #tpu.memory_space<vmem>>, %arg7: memref<1x512xf32, #tpu.memory_space<vmem>>, %arg8: memref<512x128xf32, #tpu.memory_space<vmem>>, %arg9: memref<1x128xf32, #tpu.memory_space<vmem>>, %arg10: memref<128x128xf32, #tpu.memory_space<vmem>>) attributes {dimension_semantics = [#tpu.dimension_semantics<parallel>], iteration_bounds = array<i64: 2>, scalar_prefetch = 0 : i64, scratch_operands = 0 : i64, tpu.core_type = #tpu.core_type<tc>, window_params = [{transform_indices = @transform_0, window_bounds = array<i64: 128, 32>}, {pipeline_mode = #tpu.pipeline_mode<synchronous>, transform_indices = @transform_1, window_bounds = array<i64: 32, 128>}, {pipeline_mode = #tpu.pipeline_mode<synchronous>, transform_indices = @transform_2, window_bounds = array<i64: 1, 128>}, {pipeline_mode = #tpu.pipeline_mode<synchronous>, transform_indices = @transform_3, window_bounds = array<i64: 128, 256>}, {pipeline_mode = #tpu.pipeline_mode<synchronous>, transform_indices = @transform_4, window_bounds = array<i64: 1, 256>}, {pipeline_mode = #tpu.pipeline_mode<synchronous>, transform_indices = @transform_5, window_bounds = array<i64: 256, 512>}, {pipeline_mode = #tpu.pipeline_mode<synchronous>, transform_indices = @transform_6, window_bounds = array<i64: 1, 512>}, {pipeline_mode = #tpu.pipeline_mode<synchronous>, transform_indices = @transform_7, window_bounds = array<i64: 512, 128>}, {pipeline_mode = #tpu.pipeline_mode<synchronous>, transform_indices = @transform_8, window_bounds = array<i64: 1, 128>}, {transform_indices = @transform_9, window_bounds = array<i64: 128, 128>}]} {
    %c0 = arith.constant 0 : index
    %c0_0 = arith.constant 0 : index
    %0 = vector.load %arg1[%c0, %c0_0] : memref<128x32xf32, #tpu.memory_space<vmem>>, vector<128x32xf32>
    %c0_1 = arith.constant 0 : index
    %c0_2 = arith.constant 0 : index
    %1 = vector.load %arg2[%c0_1, %c0_2] : memref<32x128xf32, #tpu.memory_space<vmem>>, vector<32x128xf32>
    %cst = arith.constant dense<0.000000e+00> : vector<128x128xf32>
    %2 = tpu.matmul %0, %1, %cst {dimension_numbers = #tpu.dot_dimension_numbers<[1], [0], [0], [1], [0, 0, 1, 1], [], []>} : vector<128x32xf32>, vector<32x128xf32>, vector<128x128xf32> -> vector<128x128xf32>
    %c0_3 = arith.constant 0 : index
    %c0_4 = arith.constant 0 : index
    %3 = vector.load %arg3[%c0_3, %c0_4] : memref<1x128xf32, #tpu.memory_space<vmem>>, vector<1x128xf32>
    %4 = vector.broadcast %3 : vector<1x128xf32> to vector<128x128xf32>
    %5 = arith.addf %2, %4 : vector<128x128xf32>
    %cst_5 = arith.constant 0.000000e+00 : f32
    %6 = vector.broadcast %cst_5 : f32 to vector<128x128xf32>
    %7 = arith.maximumf %5, %6 : vector<128x128xf32>
    %c0_6 = arith.constant 0 : index
    %c0_7 = arith.constant 0 : index
    %8 = vector.load %arg4[%c0_6, %c0_7] : memref<128x256xf32, #tpu.memory_space<vmem>>, vector<128x256xf32>
    %cst_8 = arith.constant dense<0.000000e+00> : vector<128x256xf32>
    %9 = tpu.matmul %7, %8, %cst_8 {dimension_numbers = #tpu.dot_dimension_numbers<[1], [0], [0], [1], [0, 0, 1, 1], [], []>} : vector<128x128xf32>, vector<128x256xf32>, vector<128x256xf32> -> vector<128x256xf32>
    %c0_9 = arith.constant 0 : index
    %c0_10 = arith.constant 0 : index
    %10 = vector.load %arg5[%c0_9, %c0_10] : memref<1x256xf32, #tpu.memory_space<vmem>>, vector<1x256xf32>
    %11 = vector.broadcast %10 : vector<1x256xf32> to vector<128x256xf32>
    %12 = arith.addf %9, %11 : vector<128x256xf32>
    %cst_11 = arith.constant 0.000000e+00 : f32
    %13 = vector.broadcast %cst_11 : f32 to vector<128x256xf32>
    %14 = arith.maximumf %12, %13 : vector<128x256xf32>
    %c0_12 = arith.constant 0 : index
    %c0_13 = arith.constant 0 : index
    %15 = vector.load %arg6[%c0_12, %c0_13] : memref<256x512xf32, #tpu.memory_space<vmem>>, vector<256x512xf32>
    %cst_14 = arith.constant dense<0.000000e+00> : vector<128x512xf32>
    %16 = tpu.matmul %14, %15, %cst_14 {dimension_numbers = #tpu.dot_dimension_numbers<[1], [0], [0], [1], [0, 0, 1, 1], [], []>} : vector<128x256xf32>, vector<256x512xf32>, vector<128x512xf32> -> vector<128x512xf32>
    %c0_15 = arith.constant 0 : index
    %c0_16 = arith.constant 0 : index
    %17 = vector.load %arg7[%c0_15, %c0_16] : memref<1x512xf32, #tpu.memory_space<vmem>>, vector<1x512xf32>
    %18 = vector.broadcast %17 : vector<1x512xf32> to vector<128x512xf32>
    %19 = arith.addf %16, %18 : vector<128x512xf32>
    %cst_17 = arith.constant 0.000000e+00 : f32
    %20 = vector.broadcast %cst_17 : f32 to vector<128x512xf32>
    %21 = arith.maximumf %19, %20 : vector<128x512xf32>
    %c0_18 = arith.constant 0 : index
    %c0_19 = arith.constant 0 : index
    %22 = vector.load %arg8[%c0_18, %c0_19] : memref<512x128xf32, #tpu.memory_space<vmem>>, vector<512x128xf32>
    %cst_20 = arith.constant dense<0.000000e+00> : vector<128x128xf32>
    %23 = tpu.matmul %21, %22, %cst_20 {dimension_numbers = #tpu.dot_dimension_numbers<[1], [0], [0], [1], [0, 0, 1, 1], [], []>} : vector<128x512xf32>, vector<512x128xf32>, vector<128x128xf32> -> vector<128x128xf32>
    %c0_21 = arith.constant 0 : index
    %c0_22 = arith.constant 0 : index
    %24 = vector.load %arg9[%c0_21, %c0_22] : memref<1x128xf32, #tpu.memory_space<vmem>>, vector<1x128xf32>
    %25 = vector.broadcast %24 : vector<1x128xf32> to vector<128x128xf32>
    %26 = arith.addf %23, %25 : vector<128x128xf32>
    %c0_23 = arith.constant 0 : index
    %c0_24 = arith.constant 0 : index
    %27 = vector.load %arg10[%c0_23, %c0_24] : memref<128x128xf32, #tpu.memory_space<vmem>>, vector<128x128xf32>
    tpu.vector_store %arg10[%c0_23, %c0_24], %26 {strides = array<i32>} : memref<128x128xf32, #tpu.memory_space<vmem>>, vector<128x128xf32>,
    return
  }
  func.func @transform_0(%arg0: i32) -> (i32, i32) {
    %c0_i32 = arith.constant 0 : i32
    %c0_i32_0 = arith.constant 0 : i32
    return %arg0, %c0_i32 : i32, i32
  }
  func.func @transform_1(%arg0: i32) -> (i32, i32) {
    %c0_i32 = arith.constant 0 : i32
    %c0_i32_0 = arith.constant 0 : i32
    %c0_i32_1 = arith.constant 0 : i32
    return %c0_i32, %c0_i32_0 : i32, i32
  }
  func.func @transform_2(%arg0: i32) -> (i32, i32) {
    %c0_i32 = arith.constant 0 : i32
    %c0_i32_0 = arith.constant 0 : i32
    %c0_i32_1 = arith.constant 0 : i32
    return %c0_i32, %c0_i32_0 : i32, i32
  }
  func.func @transform_3(%arg0: i32) -> (i32, i32) {
    %c0_i32 = arith.constant 0 : i32
    %c0_i32_0 = arith.constant 0 : i32
    %c0_i32_1 = arith.constant 0 : i32
    return %c0_i32, %c0_i32_0 : i32, i32
  }
  func.func @transform_4(%arg0: i32) -> (i32, i32) {
    %c0_i32 = arith.constant 0 : i32
    %c0_i32_0 = arith.constant 0 : i32
    %c0_i32_1 = arith.constant 0 : i32
    return %c0_i32, %c0_i32_0 : i32, i32
  }
  func.func @transform_5(%arg0: i32) -> (i32, i32) {
    %c0_i32 = arith.constant 0 : i32
    %c0_i32_0 = arith.constant 0 : i32
    %c0_i32_1 = arith.constant 0 : i32
    return %c0_i32, %c0_i32_0 : i32, i32
  }
  func.func @transform_6(%arg0: i32) -> (i32, i32) {
    %c0_i32 = arith.constant 0 : i32
    %c0_i32_0 = arith.constant 0 : i32
    %c0_i32_1 = arith.constant 0 : i32
    return %c0_i32, %c0_i32_0 : i32, i32
  }
  func.func @transform_7(%arg0: i32) -> (i32, i32) {
    %c0_i32 = arith.constant 0 : i32
    %c0_i32_0 = arith.constant 0 : i32
    %c0_i32_1 = arith.constant 0 : i32
    return %c0_i32, %c0_i32_0 : i32, i32
  }
  func.func @transform_8(%arg0: i32) -> (i32, i32) {
    %c0_i32 = arith.constant 0 : i32
    %c0_i32_0 = arith.constant 0 : i32
    %c0_i32_1 = arith.constant 0 : i32
    return %c0_i32, %c0_i32_0 : i32, i32
  }
  func.func @transform_9(%arg0: i32) -> (i32, i32) {
    %c0_i32 = arith.constant 0 : i32
    %c0_i32_0 = arith.constant 0 : i32
    return %arg0, %c0_i32 : i32, i32
  }
}

</mosaic_0001>

<llo_original>
// kernel: decoder_forward.1
$region0: #{decoder_forward.1}
  #allocation0 [shape = 'u32[]', space=smem, size = 0x4, offset = 0x4, fixed_abs, tag = 'smem constant byte address 0x4 - core index']
  #allocation1 [shape = 'u32[72,128]{1,0:T(1,128)}', space=vmem, size = 0x9000, scoped, tag = 'internal scratch']
  %s0 = inlined_call_operand.vmem [shape: f32[256,32], index: 0, kind: input, shape index: {}]
  %s1 = inlined_call_operand.vmem [shape: f32[32,128], index: 1, kind: input, shape index: {}]
  %s2 = inlined_call_operand.vmem [shape: f32[1,128], index: 2, kind: input, shape index: {}]
  %s3 = inlined_call_operand.vmem [shape: f32[128,256], index: 3, kind: input, shape index: {}]
  %s4 = inlined_call_operand.vmem [shape: f32[1,256], index: 4, kind: input, shape index: {}]
  %s5 = inlined_call_operand.hbm [shape: f32[256,512], index: 5, kind: input, shape index: {}]
  %s6 = inlined_call_operand.vmem [shape: f32[1,512], index: 6, kind: input, shape index: {}]
  %s7 = inlined_call_operand.hbm [shape: f32[512,128], index: 7, kind: input, shape index: {}]
  %s8 = inlined_call_operand.vmem [shape: f32[1,128], index: 8, kind: input, shape index: {}]
  %s9 = inlined_call_operand.vmem [shape: f32[256,128], index: 9, kind: output, shape index: {}]
  %s10 = sld [smem:[#allocation0]]
  $region77: #{decoder_forward.1} parent=0
    _
  %s12 = ssub.s32 1, %s10
  %s13 = scalar_select 0, %s12, %s10
  $region1: #{decoder_forward.1} parent=0
    #allocation2 [shape = 'u8[524288]{0}', space=vmem, size = 0x80000, scoped, tag = 'input window, operand 5, single buffered']
    #allocation3 [shape = 's32[2]{0}', space=sflag, size = 0x8, scoped, tag = 'scoped memory for decoder_forward.1']
    #allocation4 [shape = 'u8[262144]{0}', space=vmem, size = 0x40000, scoped, tag = 'input window, operand 7, single buffered']
    #allocation5 [shape = 's32[1]{0}', space=sflag, size = 0x4, scoped, tag = 'scoped memory for decoder_forward.1']
    %14 = vsyncpa [#allocation3], 0
    %15 = vsyncpa [#allocation5], 0
    loop: start=0, step=1, limit=4
    $region2: #{decoder_forward.1} parent=1 // loop_pre_header
      _
    $region3: #{decoder_forward.1} parent=1 // loop_header
      %s17 = sphi 0, %s21
      %p18 = scmp.ge.s32.totalorder %s17, 4
      %s27 = sphi 0, %s29
      %s30 = sphi 0, %s27
      %s31 = sphi 0, %s30
      %s47 = sphi 0, %s31
      %s51 = sphi 0, %s51
      %s53 = sphi 0, %s51
      %s54 = sphi 0, %s53
      %s68 = sphi 0, %s54
      %s72 = sphi 0, %s72
      %s74 = sphi 0, %s72
      %s75 = sphi 0, %s74
      %s89 = sphi 0, %s75
      %s93 = sphi 0, %s93
      %s95 = sphi 0, %s93
      %s96 = sphi 0, %s95
      %s110 = sphi 0, %s96
      %s114 = sphi 0, %s114
      %s116 = sphi 0, %s114
      %s117 = sphi 0, %s116
      %s131 = sphi 0, %s117
      %s135 = sphi 0, %s135
      %s137 = sphi 0, %s135
      %s138 = sphi 0, %s137
      %s152 = sphi 0, %s138
      %s156 = sphi 0, %s156
      %s158 = sphi 0, %s156
      %s159 = sphi 0, %s158
      %s173 = sphi 0, %s159
      %s177 = sphi 0, %s177
      %s179 = sphi 0, %s177
      %s180 = sphi 0, %s179
      %s194 = sphi 0, %s180
      %s198 = sphi 0, %s198
      %s200 = sphi 0, %s198
      %s201 = sphi 0, %s200
      %s215 = sphi 0, %s201
      %s221 = sphi 0, %s223
      %s224 = sphi 0, %s221
      %s225 = sphi 0, %s224
      %s241 = sphi 0, %s225
    $region4: #{decoder_forward.1} parent=1 // loop_header_branch
      %20 = sbr.rel (%p18) target = $region8
    $region5: #{decoder_forward.1} parent=1 // loop_body
      %s22 = ssub.s32 %s17, 1
      %s23 = ssub.s32 %s17, 2
      %s24 = sadd.s32 %s17, 1
      %s25 = ssub.s32 %s17, %s24
      %p26 = scmp.eq.s32.totalorder %s25, 0
      %s28 = sadd.s32 %s27, 1
      %s29 = scalar_select %p26, %s27, %s28
      %p32 = pneg %p26
      %p33 = scmp.eq.s32.totalorder %s17, 1
      %p34 = por %p32, %p33
      %p35 = scmp.ne.s32.totalorder %s27, %s30
      %p36 = scmp.eq.s32.totalorder %s17, 0
      %p37 = por %p35, %p36
      %p38 = scmp.ne.s32.totalorder %s27, %s30
      %p39 = scmp.eq.s32.totalorder %s22, 1
      %p40 = por %p38, %p39
      %p41 = scmp.ne.s32.totalorder %s30, %s31
      %p42 = scmp.eq.s32.totalorder %s22, 0
      %p43 = por %p41, %p42
      %p44 = scmp.ne.s32.totalorder %s30, %s31
      %p45 = scmp.eq.s32.totalorder %s23, 1
      %p46 = por %p44, %p45
      %p48 = scmp.ne.s32.totalorder %s31, %s47
      %p49 = scmp.eq.s32.totalorder %s23, 0
      %p50 = por %p48, %p49
      %s52 = sadd.s32 %s51, 1
      %p55 = scmp.eq.s32.totalorder %s17, 1
      %p56 = scmp.ne.s32.totalorder %s51, %s53
      %p57 = scmp.eq.s32.totalorder %s17, 0
      %p58 = por %p56, %p57
      %p59 = scmp.ne.s32.totalorder %s51, %s53
      %p60 = scmp.eq.s32.totalorder %s22, 1
      %p61 = por %p59, %p60
      %p62 = scmp.ne.s32.totalorder %s53, %s54
      %p63 = scmp.eq.s32.totalorder %s22, 0
      %p64 = por %p62, %p63
      %p65 = scmp.ne.s32.totalorder %s53, %s54
      %p66 = scmp.eq.s32.totalorder %s23, 1
      %p67 = por %p65, %p66
      %p69 = scmp.ne.s32.totalorder %s54, %s68
      %p70 = scmp.eq.s32.totalorder %s23, 0
      %p71 = por %p69, %p70
      %s73 = sadd.s32 %s72, 1
      %p76 = scmp.eq.s32.totalorder %s17, 1
      %p77 = scmp.ne.s32.totalorder %s72, %s74
      %p78 = scmp.eq.s32.totalorder %s17, 0
      %p79 = por %p77, %p78
      %p80 = scmp.ne.s32.totalorder %s72, %s74
      %p81 = scmp.eq.s32.totalorder %s22, 1
      %p82 = por %p80, %p81
      %p83 = scmp.ne.s32.totalorder %s74, %s75
      %p84 = scmp.eq.s32.totalorder %s22, 0
      %p85 = por %p83, %p84
      %p86 = scmp.ne.s32.totalorder %s74, %s75
      %p87 = scmp.eq.s32.totalorder %s23, 1
      %p88 = por %p86, %p87
      %p90 = scmp.ne.s32.totalorder %s75, %s89
      %p91 = scmp.eq.s32.totalorder %s23, 0
      %p92 = por %p90, %p91
      %s94 = sadd.s32 %s93, 1
      %p97 = scmp.eq.s32.totalorder %s17, 1
      %p98 = scmp.ne.s32.totalorder %s93, %s95
      %p99 = scmp.eq.s32.totalorder %s17, 0
      %p100 = por %p98, %p99
      %p101 = scmp.ne.s32.totalorder %s93, %s95
      %p102 = scmp.eq.s32.totalorder %s22, 1
      %p103 = por %p101, %p102
      %p104 = scmp.ne.s32.totalorder %s95, %s96
      %p105 = scmp.eq.s32.totalorder %s22, 0
      %p106 = por %p104, %p105
      %p107 = scmp.ne.s32.totalorder %s95, %s96
      %p108 = scmp.eq.s32.totalorder %s23, 1
      %p109 = por %p107, %p108
      %p111 = scmp.ne.s32.totalorder %s96, %s110
      %p112 = scmp.eq.s32.totalorder %s23, 0
      %p113 = por %p111, %p112
      %s115 = sadd.s32 %s114, 1
      %p118 = scmp.eq.s32.totalorder %s17, 1
      %p119 = scmp.ne.s32.totalorder %s114, %s116
      %p120 = scmp.eq.s32.totalorder %s17, 0
      %p121 = por %p119, %p120
      %p122 = scmp.ne.s32.totalorder %s114, %s116
      %p123 = scmp.eq.s32.totalorder %s22, 1
      %p124 = por %p122, %p123
      %p125 = scmp.ne.s32.totalorder %s116, %s117
      %p126 = scmp.eq.s32.totalorder %s22, 0
      %p127 = por %p125, %p126
      %p128 = scmp.ne.s32.totalorder %s116, %s117
      %p129 = scmp.eq.s32.totalorder %s23, 1
      %p130 = por %p128, %p129
      %p132 = scmp.ne.s32.totalorder %s117, %s131
      %p133 = scmp.eq.s32.totalorder %s23, 0
      %p134 = por %p132, %p133
      %s136 = sadd.s32 %s135, 1
      %p139 = scmp.eq.s32.totalorder %s17, 1
      %p140 = scmp.ne.s32.totalorder %s135, %s137
      %p141 = scmp.eq.s32.totalorder %s17, 0
      %p142 = por %p140, %p141
      %p143 = scmp.ne.s32.totalorder %s135, %s137
      %p144 = scmp.eq.s32.totalorder %s22, 1
      %p145 = por %p143, %p144
      %p146 = scmp.ne.s32.totalorder %s137, %s138
      %p147 = scmp.eq.s32.totalorder %s22, 0
      %p148 = por %p146, %p147
      %p149 = scmp.ne.s32.totalorder %s137, %s138
      %p150 = scmp.eq.s32.totalorder %s23, 1
      %p151 = por %p149, %p150
      %p153 = scmp.ne.s32.totalorder %s138, %s152
      %p154 = scmp.eq.s32.totalorder %s23, 0
      %p155 = por %p153, %p154
      %s157 = sadd.s32 %s156, 1
      %p160 = scmp.eq.s32.totalorder %s17, 1
      %p161 = scmp.ne.s32.totalorder %s156, %s158
      %p162 = scmp.eq.s32.totalorder %s17, 0
      %p163 = por %p161, %p162
      %p164 = scmp.ne.s32.totalorder %s156, %s158
      %p165 = scmp.eq.s32.totalorder %s22, 1
      %p166 = por %p164, %p165
      %p167 = scmp.ne.s32.totalorder %s158, %s159
      %p168 = scmp.eq.s32.totalorder %s22, 0
      %p169 = por %p167, %p168
      %p170 = scmp.ne.s32.totalorder %s158, %s159
      %p171 = scmp.eq.s32.totalorder %s23, 1
      %p172 = por %p170, %p171
      %p174 = scmp.ne.s32.totalorder %s159, %s173
      %p175 = scmp.eq.s32.totalorder %s23, 0
      %p176 = por %p174, %p175
      %s178 = sadd.s32 %s177, 1
      %p181 = scmp.eq.s32.totalorder %s17, 1
      %p182 = scmp.ne.s32.totalorder %s177, %s179
      %p183 = scmp.eq.s32.totalorder %s17, 0
      %p184 = por %p182, %p183
      %p185 = scmp.ne.s32.totalorder %s177, %s179
      %p186 = scmp.eq.s32.totalorder %s22, 1
      %p187 = por %p185, %p186
      %p188 = scmp.ne.s32.totalorder %s179, %s180
      %p189 = scmp.eq.s32.totalorder %s22, 0
      %p190 = por %p188, %p189
      %p191 = scmp.ne.s32.totalorder %s179, %s180
      %p192 = scmp.eq.s32.totalorder %s23, 1
      %p193 = por %p191, %p192
      %p195 = scmp.ne.s32.totalorder %s180, %s194
      %p196 = scmp.eq.s32.totalorder %s23, 0
      %p197 = por %p195, %p196
      %s199 = sadd.s32 %s198, 1
      %p202 = scmp.eq.s32.totalorder %s17, 1
      %p203 = scmp.ne.s32.totalorder %s198, %s200
      %p204 = scmp.eq.s32.totalorder %s17, 0
      %p205 = por %p203, %p204
      %p206 = scmp.ne.s32.totalorder %s198, %s200
      %p207 = scmp.eq.s32.totalorder %s22, 1
      %p208 = por %p206, %p207
      %p209 = scmp.ne.s32.totalorder %s200, %s201
      %p210 = scmp.eq.s32.totalorder %s22, 0
      %p211 = por %p209, %p210
      %p212 = scmp.ne.s32.totalorder %s200, %s201
      %p213 = scmp.eq.s32.totalorder %s23, 1
      %p214 = por %p212, %p213
      %p216 = scmp.ne.s32.totalorder %s201, %s215
      %p217 = scmp.eq.s32.totalorder %s23, 0
      %p218 = por %p216, %p217
      %s219 = ssub.s32 %s17, %s24
      %p220 = scmp.eq.s32.totalorder %s219, 0
      %s222 = sadd.s32 %s221, 1
      %s223 = scalar_select %p220, %s221, %s222
      %p226 = pneg %p220
      %p227 = scmp.eq.s32.totalorder %s17, 1
      %p228 = por %p226, %p227
      %p229 = scmp.ne.s32.totalorder %s221, %s224
      %p230 = scmp.eq.s32.totalorder %s17, 0
      %p231 = por %p229, %p230
      %p232 = scmp.ne.s32.totalorder %s221, %s224
      %p233 = scmp.eq.s32.totalorder %s22, 1
      %p234 = por %p232, %p233
      %p235 = scmp.ne.s32.totalorder %s224, %s225
      %p236 = scmp.eq.s32.totalorder %s22, 0
      %p237 = por %p235, %p236
      %p238 = scmp.ne.s32.totalorder %s224, %s225
      %p239 = scmp.eq.s32.totalorder %s23, 1
      %p240 = por %p238, %p239
      %p242 = scmp.ne.s32.totalorder %s225, %s241
      %p243 = scmp.eq.s32.totalorder %s23, 0
      %p244 = por %p242, %p243
      %p245 = scmp.le.s32.totalorder 1, %s17
      %p246 = scmp.lt.s32.totalorder %s17, 3
      %p247 = pnand %p245, %p246
      %p248 = pneg %p247
      // Predicated region
      $region9: #{decoder_forward.1} parent=5 // pred_check
        _
      $region10: #{decoder_forward.1} parent=5 // pred_check_branch
        %250 = sbr.rel (%p247) target = $region12
      $region11: #{decoder_forward.1} parent=5 // pred_region
        %s251 = ssub.s32 %s17, 1
        // Predicated region
        $region13: #{decoder_forward.1} parent=11 // pred_check
          %p252 = pneg %p64
        $region14: #{decoder_forward.1} parent=11 // pred_check_branch
          %254 = sbr.rel (%p252) target = $region16
        $region15: #{decoder_forward.1} parent=11 // pred_region
          _
        $region16: #{decoder_forward.1} parent=11 // pred_fallthru
          _
        // Predicated region
        $region17: #{decoder_forward.1} parent=11 // pred_check
          %p255 = pneg %p85
        $region18: #{decoder_forward.1} parent=11 // pred_check_branch
          %257 = sbr.rel (%p255) target = $region20
        $region19: #{decoder_forward.1} parent=11 // pred_region
          _
        $region20: #{decoder_forward.1} parent=11 // pred_fallthru
          _
        // Predicated region
        $region21: #{decoder_forward.1} parent=11 // pred_check
          %p258 = pneg %p106
        $region22: #{decoder_forward.1} parent=11 // pred_check_branch
          %260 = sbr.rel (%p258) target = $region24
        $region23: #{decoder_forward.1} parent=11 // pred_region
          _
        $region24: #{decoder_forward.1} parent=11 // pred_fallthru
          _
        // Predicated region
        $region25: #{decoder_forward.1} parent=11 // pred_check
          %p261 = pneg %p127
        $region26: #{decoder_forward.1} parent=11 // pred_check_branch
          %263 = sbr.rel (%p261) target = $region28
        $region27: #{decoder_forward.1} parent=11 // pred_region
          _
        $region28: #{decoder_forward.1} parent=11 // pred_fallthru
          _
        // Predicated region
        $region29: #{decoder_forward.1} parent=11 // pred_check
          %p264 = pneg %p148
        $region30: #{decoder_forward.1} parent=11 // pred_check_branch
          %266 = sbr.rel (%p264) target = $region32
        $region31: #{decoder_forward.1} parent=11 // pred_region
          %268 = vsyncadd [#allocation3], 0
          %s269 = sshll.u32 %s5, 4
          %s270 = int_to_ptr.hbm [resolvable:$true] %s269
          %s271 = sshll.u32 [#allocation2], 4
          %s272 = int_to_ptr.vmem [resolvable:$true] %s271
          %277 = dma.hbm_to_vmem [thread:$0]  %s270, 16384, %s272, [#allocation3], 512, 512, 32
        $region32: #{decoder_forward.1} parent=11 // pred_fallthru
          _
        // Predicated region
        $region33: #{decoder_forward.1} parent=11 // pred_check
          %p278 = pneg %p169
        $region34: #{decoder_forward.1} parent=11 // pred_check_branch
          %280 = sbr.rel (%p278) target = $region36
        $region35: #{decoder_forward.1} parent=11 // pred_region
          _
        $region36: #{decoder_forward.1} parent=11 // pred_fallthru
          _
        // Predicated region
        $region37: #{decoder_forward.1} parent=11 // pred_check
          %p281 = pneg %p190
        $region38: #{decoder_forward.1} parent=11 // pred_check_branch
          %283 = sbr.rel (%p281) target = $region40
        $region39: #{decoder_forward.1} parent=11 // pred_region
          %285 = vsyncadd [#allocation5], 0
          %s286 = sshll.u32 %s7, 4
          %s287 = int_to_ptr.hbm [resolvable:$true] %s286
          %s288 = sshll.u32 [#allocation4], 4
          %s289 = int_to_ptr.vmem [resolvable:$true] %s288
          %294 = dma.hbm_to_vmem [thread:$0]  %s287, 8192, %s289, [#allocation5], 128, 128, 8
        $region40: #{decoder_forward.1} parent=11 // pred_fallthru
          _
        // Predicated region
        $region41: #{decoder_forward.1} parent=11 // pred_check
          %p295 = pneg %p211
        $region42: #{decoder_forward.1} parent=11 // pred_check_branch
          %297 = sbr.rel (%p295) target = $region44
        $region43: #{decoder_forward.1} parent=11 // pred_region
          _
        $region44: #{decoder_forward.1} parent=11 // pred_fallthru
          _
      $region12: #{decoder_forward.1} parent=5 // pred_fallthru
        _
      %p298 = scmp.lt.s32.totalorder %s17, 2
      // Predicated region
      $region45: #{decoder_forward.1} parent=5 // pred_check
        %p299 = pneg %p298
      $region46: #{decoder_forward.1} parent=5 // pred_check_branch
        %301 = sbr.rel (%p299) target = $region48
      $region47: #{decoder_forward.1} parent=5 // pred_region
        // Predicated region
        $region49: #{decoder_forward.1} parent=47 // pred_check
          %p302 = pneg %p37
        $region50: #{decoder_forward.1} parent=47 // pred_check_branch
          %304 = sbr.rel (%p302) target = $region52
        $region51: #{decoder_forward.1} parent=47 // pred_region
          %s305 = smul.u32 16, %s17
          %p306 = scmp.lt.s32.totalorder %s305, 31
          %s307 = scalar_select %p306, %s305, 31
          %s308 = smul.addr %s307, 8
          %s309 = scalar_lea.vmem %s0, %s308
          %s310 = smul.u32 16, %s17
        $region52: #{decoder_forward.1} parent=47 // pred_fallthru
          _
      $region48: #{decoder_forward.1} parent=5 // pred_fallthru
        _
      %p311 = scmp.le.s32.totalorder 1, %s17
      %p312 = scmp.lt.s32.totalorder %s17, 3
      %p313 = pnand %p311, %p312
      %p314 = pneg %p313
      // Predicated region
      $region53: #{decoder_forward.1} parent=5 // pred_check
        _
      $region54: #{decoder_forward.1} parent=5 // pred_check_branch
        %316 = sbr.rel (%p313) target = $region56
      $region55: #{decoder_forward.1} parent=5 // pred_region
        %s317 = ssub.s32 %s17, 1
        // Predicated region
        $region57: #{decoder_forward.1} parent=55 // pred_check
          %p318 = pneg %p148
        $region58: #{decoder_forward.1} parent=55 // pred_check_branch
          %320 = sbr.rel (%p318) target = $region60
        $region59: #{decoder_forward.1} parent=55 // pred_region
          %322 = dma.done [#allocation3], 16384
        $region60: #{decoder_forward.1} parent=55 // pred_fallthru
          _
        // Predicated region
        $region61: #{decoder_forward.1} parent=55 // pred_check
          %p323 = pneg %p190
        $region62: #{decoder_forward.1} parent=55 // pred_check_branch
          %325 = sbr.rel (%p323) target = $region64
        $region63: #{decoder_forward.1} parent=55 // pred_region
          %327 = dma.done [#allocation5], 8192
        $region64: #{decoder_forward.1} parent=55 // pred_fallthru
          _
        %s328 = smul.u32 16, %s22
        %p329 = scmp.lt.s32.totalorder %s328, 31
        %s330 = scalar_select %p329, %s328, 31
        %s331 = smul.addr %s330, 8
        %s332 = scalar_lea.vmem %s0, %s331
        %p333 = pneg %p43
        %p334 = pneg %p40
        %p335 = pneg %p64
        %p336 = pneg %p61
        %p337 = pneg %p85
        %p338 = pneg %p82
        %p339 = pneg %p106
        %p340 = pneg %p103
        %p341 = pneg %p127
        %p342 = pneg %p124
        %p343 = pneg %p148
        %p344 = pneg %p145
        %p345 = pneg %p169
        %p346 = pneg %p166
        %p347 = pneg %p190
        %p348 = pneg %p187
        %p349 = pneg %p211
        %p350 = pneg %p208
        %p351 = pneg %p237
        %p352 = pneg %p234
        %s353 = smul.u32 16, %s22
        %p354 = scmp.lt.s32.totalorder %s353, 31
        %s355 = scalar_select %p354, %s353, 31
        %s356 = smul.addr %s355, 8
        %s357 = scalar_lea.vmem %s9, %s356
        %s358 = smul.u32 16, %s22
        %p359 = scmp.lt.s32.totalorder %s358, 31
        %s360 = scalar_select %p359, %s358, 31
        %s361 = smul.addr %s360, 8
        %s362 = scalar_lea.vmem %s0, %s361
        %s363 = smul.u32 16, %s22
        %s364 = smul.u32 16, %s22
        %p365 = scmp.lt.s32.totalorder %s364, 31
        %s366 = scalar_select %p365, %s364, 31
        %s367 = smul.addr %s366, 8
        %s368 = scalar_lea.vmem %s9, %s367
        %s369 = smul.u32 16, %s22
        %v370 = vld [vmem:[%s362] sm:$0xff]
        %v371 = vld [vmem:[%s362 + $0x8] sm:$0xff]
        %v372 = vld [vmem:[%s362 + $0x10] sm:$0xff]
        %v373 = vld [vmem:[%s362 + $0x18] sm:$0xff]
        %v374 = vld [vmem:[%s362 + $0x20] sm:$0xff]
        %v375 = vld [vmem:[%s362 + $0x28] sm:$0xff]
        %v376 = vld [vmem:[%s362 + $0x30] sm:$0xff]
        %v377 = vld [vmem:[%s362 + $0x38] sm:$0xff]
        %v378 = vld [vmem:[%s362 + $0x40] sm:$0xff]
        %v379 = vld [vmem:[%s362 + $0x48] sm:$0xff]
        %v380 = vld [vmem:[%s362 + $0x50] sm:$0xff]
        %v381 = vld [vmem:[%s362 + $0x58] sm:$0xff]
        %v382 = vld [vmem:[%s362 + $0x60] sm:$0xff]
        %v383 = vld [vmem:[%s362 + $0x68] sm:$0xff]
        %v384 = vld [vmem:[%s362 + $0x70] sm:$0xff]
        %v385 = vld [vmem:[%s362 + $0x78] sm:$0xff]
        %v386 = vld [vmem:[%s1] sm:$0xff]
        %v387 = vld [vmem:[%s1 + $0x8] sm:$0xff]
        %v388 = vld [vmem:[%s1 + $0x10] sm:$0xff]
        %v389 = vld [vmem:[%s1 + $0x18] sm:$0xff]
        %v390 = vld [vmem:[%s2] sm:$0x1]
        %v392 = vperm.slane %v390, 0
        %vm394 = vcmask 261120
        %v396 = vsel %vm394, %v370, 0
        %v399 = vsel %vm394, %v371, 0
        %v402 = vsel %vm394, %v372, 0
        %v405 = vsel %vm394, %v373, 0
        %v408 = vsel %vm394, %v374, 0
        %v411 = vsel %vm394, %v375, 0
        %v414 = vsel %vm394, %v376, 0
        %v417 = vsel %vm394, %v377, 0
        %v420 = vsel %vm394, %v378, 0
        %v423 = vsel %vm394, %v379, 0
        %v426 = vsel %vm394, %v380, 0
        %v429 = vsel %vm394, %v381, 0
        %v432 = vsel %vm394, %v382, 0
        %v435 = vsel %vm394, %v383, 0
        %v438 = vsel %vm394, %v384, 0
        %v441 = vsel %vm394, %v385, 0
        %443 = vmatpush.msra.mxu0 0.0
        %444 = vmatpush.msra.mxu0 0.0
        %445 = vmatpush.msra.mxu0 0.0
        %446 = vmatpush.msra.mxu0 0.0
        %447 = vmatpush.msra.mxu0 0.0
        %448 = vmatpush.msra.mxu0 0.0
        %449 = vmatpush.msra.mxu0 0.0
        %450 = vmatpush.msra.mxu0 0.0
        %451 = vmatpush.msra.mxu0 0.0
        %452 = vmatpush.msra.mxu0 0.0
        %453 = vmatpush.msra.mxu0 0.0
        %454 = vmatpush.msra.mxu0 0.0
        %455 = vmatpush.msra.mxu0 %v389
        %456 = vmatpush.msra.mxu0 %v388
        %457 = vmatpush.msra.mxu0 %v387
        %458 = vmatpush.msra.mxu0 %v386
        %459 = vmatmul.f32.gmra.mxu0 %v396
        %v460 = vpop.f32.mrf.mxu0
        %v461 = vadd.f32 %v392, %v460
        %462 = vmatmul.f32.gmra.mxu0 %v399
        %v463 = vpop.f32.mrf.mxu0
        %v464 = vadd.f32 %v392, %v463
        %465 = vmatmul.f32.gmra.mxu0 %v402
        %v466 = vpop.f32.mrf.mxu0
        %v467 = vadd.f32 %v392, %v466
        %468 = vmatmul.f32.gmra.mxu0 %v405
        %v469 = vpop.f32.mrf.mxu0
        %v470 = vadd.f32 %v392, %v469
        %471 = vmatmul.f32.gmra.mxu0 %v408
        %v472 = vpop.f32.mrf.mxu0
        %v473 = vadd.f32 %v392, %v472
        %474 = vmatmul.f32.gmra.mxu0 %v411
        %v475 = vpop.f32.mrf.mxu0
        %v476 = vadd.f32 %v392, %v475
        %477 = vmatmul.f32.gmra.mxu0 %v414
        %v478 = vpop.f32.mrf.mxu0
        %v479 = vadd.f32 %v392, %v478
        %480 = vmatmul.f32.gmra.mxu0 %v417
        %v481 = vpop.f32.mrf.mxu0
        %v482 = vadd.f32 %v392, %v481
        %483 = vmatmul.f32.gmra.mxu0 %v420
        %v484 = vpop.f32.mrf.mxu0
        %v485 = vadd.f32 %v392, %v484
        %486 = vmatmul.f32.gmra.mxu0 %v423
        %v487 = vpop.f32.mrf.mxu0
        %v488 = vadd.f32 %v392, %v487
        %489 = vmatmul.f32.gmra.mxu0 %v426
        %v490 = vpop.f32.mrf.mxu0
        %v491 = vadd.f32 %v392, %v490
        %492 = vmatmul.f32.gmra.mxu0 %v429
        %v493 = vpop.f32.mrf.mxu0
        %v494 = vadd.f32 %v392, %v493
        %495 = vmatmul.f32.gmra.mxu0 %v432
        %v496 = vpop.f32.mrf.mxu0
        %v497 = vadd.f32 %v392, %v496
        %498 = vmatmul.f32.gmra.mxu0 %v435
        %v499 = vpop.f32.mrf.mxu0
        %v500 = vadd.f32 %v392, %v499
        %501 = vmatmul.f32.gmra.mxu0 %v438
        %v502 = vpop.f32.mrf.mxu0
        %v503 = vadd.f32 %v392, %v502
        %504 = vmatmul.f32.gmra.mxu0 %v441
        %v505 = vpop.f32.mrf.mxu0
        %v506 = vadd.f32 %v392, %v505
        %507 = vdwg.mxu0
        %v508 = vmax.f32 %v461, 0.0
        %v509 = vmax.f32 %v464, 0.0
        %v510 = vmax.f32 %v467, 0.0
        %v511 = vmax.f32 %v470, 0.0
        %v512 = vmax.f32 %v473, 0.0
        %v513 = vmax.f32 %v476, 0.0
        %v514 = vmax.f32 %v479, 0.0
        %v515 = vmax.f32 %v482, 0.0
        %v516 = vmax.f32 %v485, 0.0
        %v517 = vmax.f32 %v488, 0.0
        %v518 = vmax.f32 %v491, 0.0
        %v519 = vmax.f32 %v494, 0.0
        %v520 = vmax.f32 %v497, 0.0
        %v521 = vmax.f32 %v500, 0.0
        %v522 = vmax.f32 %v503, 0.0
        %v523 = vmax.f32 %v506, 0.0
        %v524 = vld [vmem:[%s3] sm:$0xff]
        %v525 = vld [vmem:[%s3 + $0x8] sm:$0xff]
        %v526 = vld [vmem:[%s3 + $0x10] sm:$0xff]
        %v527 = vld [vmem:[%s3 + $0x18] sm:$0xff]
        %v528 = vld [vmem:[%s3 + $0x20] sm:$0xff]
        %v529 = vld [vmem:[%s3 + $0x28] sm:$0xff]
        %v530 = vld [vmem:[%s3 + $0x30] sm:$0xff]
        %v531 = vld [vmem:[%s3 + $0x38] sm:$0xff]
        %v532 = vld [vmem:[%s3 + $0x40] sm:$0xff]
        %v533 = vld [vmem:[%s3 + $0x48] sm:$0xff]
        %v534 = vld [vmem:[%s3 + $0x50] sm:$0xff]
        %v535 = vld [vmem:[%s3 + $0x58] sm:$0xff]
        %v536 = vld [vmem:[%s3 + $0x60] sm:$0xff]
        %v537 = vld [vmem:[%s3 + $0x68] sm:$0xff]
        %v538 = vld [vmem:[%s3 + $0x70] sm:$0xff]
        %v539 = vld [vmem:[%s3 + $0x78] sm:$0xff]
        %v540 = vld [vmem:[%s3 + $0x80] sm:$0xff]
        %v541 = vld [vmem:[%s3 + $0x88] sm:$0xff]
        %v542 = vld [vmem:[%s3 + $0x90] sm:$0xff]
        %v543 = vld [vmem:[%s3 + $0x98] sm:$0xff]
        %v544 = vld [vmem:[%s3 + $0xa0] sm:$0xff]
        %v545 = vld [vmem:[%s3 + $0xa8] sm:$0xff]
        %v546 = vld [vmem:[%s3 + $0xb0] sm:$0xff]
        %v547 = vld [vmem:[%s3 + $0xb8] sm:$0xff]
        %v548 = vld [vmem:[%s3 + $0xc0] sm:$0xff]
        %v549 = vld [vmem:[%s3 + $0xc8] sm:$0xff]
        %v550 = vld [vmem:[%s3 + $0xd0] sm:$0xff]
        %v551 = vld [vmem:[%s3 + $0xd8] sm:$0xff]
        %v552 = vld [vmem:[%s3 + $0xe0] sm:$0xff]
        %v553 = vld [vmem:[%s3 + $0xe8] sm:$0xff]
        %v554 = vld [vmem:[%s3 + $0xf0] sm:$0xff]
        %v555 = vld [vmem:[%s3 + $0xf8] sm:$0xff]
        %v556 = vld [vmem:[%s4] sm:$0x3]
        %v558 = vperm.slane %v556, 0
        %v559 = vperm.slane %v556, 1
        %562 = vmatpush.msra.mxu0 %v554
        %563 = vmatpush.msra.mxu0 %v552
        %564 = vmatpush.msra.mxu0 %v550
        %565 = vmatpush.msra.mxu0 %v548
        %566 = vmatpush.msra.mxu0 %v546
        %567 = vmatpush.msra.mxu0 %v544
        %568 = vmatpush.msra.mxu0 %v542
        %569 = vmatpush.msra.mxu0 %v540
        %570 = vmatpush.msra.mxu0 %v538
        %571 = vmatpush.msra.mxu0 %v536
        %572 = vmatpush.msra.mxu0 %v534
        %573 = vmatpush.msra.mxu0 %v532
        %574 = vmatpush.msra.mxu0 %v530
        %575 = vmatpush.msra.mxu0 %v528
        %576 = vmatpush.msra.mxu0 %v526
        %577 = vmatpush.msra.mxu0 %v524
        %578 = vmatmul.f32.gmra.mxu0 %v508
        %v579 = vpop.f32.mrf.mxu0
        %v580 = vadd.f32 %v558, %v579
        %581 = vmatmul.f32.gmra.mxu0 %v509
        %v582 = vpop.f32.mrf.mxu0
        %v583 = vadd.f32 %v558, %v582
        %584 = vmatmul.f32.gmra.mxu0 %v510
        %v585 = vpop.f32.mrf.mxu0
        %v586 = vadd.f32 %v558, %v585
        %587 = vmatmul.f32.gmra.mxu0 %v511
        %v588 = vpop.f32.mrf.mxu0
        %v589 = vadd.f32 %v558, %v588
        %590 = vmatmul.f32.gmra.mxu0 %v512
        %v591 = vpop.f32.mrf.mxu0
        %v592 = vadd.f32 %v558, %v591
        %593 = vmatmul.f32.gmra.mxu0 %v513
        %v594 = vpop.f32.mrf.mxu0
        %v595 = vadd.f32 %v558, %v594
        %596 = vmatmul.f32.gmra.mxu0 %v514
        %v597 = vpop.f32.mrf.mxu0
        %v598 = vadd.f32 %v558, %v597
        %599 = vmatmul.f32.gmra.mxu0 %v515
        %v600 = vpop.f32.mrf.mxu0
        %v601 = vadd.f32 %v558, %v600
        %602 = vmatmul.f32.gmra.mxu0 %v516
        %v603 = vpop.f32.mrf.mxu0
        %v604 = vadd.f32 %v558, %v603
        %605 = vmatmul.f32.gmra.mxu0 %v517
        %v606 = vpop.f32.mrf.mxu0
        %v607 = vadd.f32 %v558, %v606
        %608 = vmatmul.f32.gmra.mxu0 %v518
        %v609 = vpop.f32.mrf.mxu0
        %v610 = vadd.f32 %v558, %v609
        %611 = vmatmul.f32.gmra.mxu0 %v519
        %v612 = vpop.f32.mrf.mxu0
        %v613 = vadd.f32 %v558, %v612
        %614 = vmatmul.f32.gmra.mxu0 %v520
        %v615 = vpop.f32.mrf.mxu0
        %v616 = vadd.f32 %v558, %v615
        %617 = vmatmul.f32.gmra.mxu0 %v521
        %v618 = vpop.f32.mrf.mxu0
        %v619 = vadd.f32 %v558, %v618
        %620 = vmatmul.f32.gmra.mxu0 %v522
        %v621 = vpop.f32.mrf.mxu0
        %v622 = vadd.f32 %v558, %v621
        %623 = vmatmul.f32.gmra.mxu0 %v523
        %v624 = vpop.f32.mrf.mxu0
        %v625 = vadd.f32 %v558, %v624
        %626 = vdwg.mxu0
        %627 = vmatpush.msra.mxu0 %v555
        %628 = vmatpush.msra.mxu0 %v553
        %629 = vmatpush.msra.mxu0 %v551
        %630 = vmatpush.msra.mxu0 %v549
        %631 = vmatpush.msra.mxu0 %v547
        %632 = vmatpush.msra.mxu0 %v545
        %633 = vmatpush.msra.mxu0 %v543
        %634 = vmatpush.msra.mxu0 %v541
        %635 = vmatpush.msra.mxu0 %v539
        %636 = vmatpush.msra.mxu0 %v537
        %637 = vmatpush.msra.mxu0 %v535
        %638 = vmatpush.msra.mxu0 %v533
        %639 = vmatpush.msra.mxu0 %v531
        %640 = vmatpush.msra.mxu0 %v529
        %641 = vmatpush.msra.mxu0 %v527
        %642 = vmatpush.msra.mxu0 %v525
        %643 = vmatmul.f32.gmra.mxu0 %v508
        %v644 = vpop.f32.mrf.mxu0
        %v645 = vadd.f32 %v559, %v644
        %646 = vmatmul.f32.gmra.mxu0 %v509
        %v647 = vpop.f32.mrf.mxu0
        %v648 = vadd.f32 %v559, %v647
        %649 = vmatmul.f32.gmra.mxu0 %v510
        %v650 = vpop.f32.mrf.mxu0
        %v651 = vadd.f32 %v559, %v650
        %652 = vmatmul.f32.gmra.mxu0 %v511
        %v653 = vpop.f32.mrf.mxu0
        %v654 = vadd.f32 %v559, %v653
        %655 = vmatmul.f32.gmra.mxu0 %v512
        %v656 = vpop.f32.mrf.mxu0
        %v657 = vadd.f32 %v559, %v656
        %658 = vmatmul.f32.gmra.mxu0 %v513
        %v659 = vpop.f32.mrf.mxu0
        %v660 = vadd.f32 %v559, %v659
        %661 = vmatmul.f32.gmra.mxu0 %v514
        %v662 = vpop.f32.mrf.mxu0
        %v663 = vadd.f32 %v559, %v662
        %664 = vmatmul.f32.gmra.mxu0 %v515
        %v665 = vpop.f32.mrf.mxu0
        %v666 = vadd.f32 %v559, %v665
        %667 = vmatmul.f32.gmra.mxu0 %v516
        %v668 = vpop.f32.mrf.mxu0
        %v669 = vadd.f32 %v559, %v668
        %670 = vmatmul.f32.gmra.mxu0 %v517
        %v671 = vpop.f32.mrf.mxu0
        %v672 = vadd.f32 %v559, %v671
        %673 = vmatmul.f32.gmra.mxu0 %v518
        %v674 = vpop.f32.mrf.mxu0
        %v675 = vadd.f32 %v559, %v674
        %676 = vmatmul.f32.gmra.mxu0 %v519
        %v677 = vpop.f32.mrf.mxu0
        %v678 = vadd.f32 %v559, %v677
        %679 = vmatmul.f32.gmra.mxu0 %v520
        %v680 = vpop.f32.mrf.mxu0
        %v681 = vadd.f32 %v559, %v680
        %682 = vmatmul.f32.gmra.mxu0 %v521
        %v683 = vpop.f32.mrf.mxu0
        %v684 = vadd.f32 %v559, %v683
        %685 = vmatmul.f32.gmra.mxu0 %v522
        %v686 = vpop.f32.mrf.mxu0
        %v687 = vadd.f32 %v559, %v686
        %688 = vmatmul.f32.gmra.mxu0 %v523
        %v689 = vpop.f32.mrf.mxu0
        %v690 = vadd.f32 %v559, %v689
        %691 = vdwg.mxu0
        %v692 = vmax.f32 %v580, 0.0
        %v693 = vmax.f32 %v645, 0.0
        %v694 = vmax.f32 %v583, 0.0
        %v695 = vmax.f32 %v648, 0.0
        %v696 = vmax.f32 %v586, 0.0
        %v697 = vmax.f32 %v651, 0.0
        %v698 = vmax.f32 %v589, 0.0
        %v699 = vmax.f32 %v654, 0.0
        %v700 = vmax.f32 %v592, 0.0
        %v701 = vmax.f32 %v657, 0.0
        %v702 = vmax.f32 %v595, 0.0
        %v703 = vmax.f32 %v660, 0.0
        %v704 = vmax.f32 %v598, 0.0
        %v705 = vmax.f32 %v663, 0.0
        %v706 = vmax.f32 %v601, 0.0
        %v707 = vmax.f32 %v666, 0.0
        %v708 = vmax.f32 %v604, 0.0
        %v709 = vmax.f32 %v669, 0.0
        %v710 = vmax.f32 %v607, 0.0
        %v711 = vmax.f32 %v672, 0.0
        %v712 = vmax.f32 %v610, 0.0
        %v713 = vmax.f32 %v675, 0.0
        %v714 = vmax.f32 %v613, 0.0
        %v715 = vmax.f32 %v678, 0.0
        %v716 = vmax.f32 %v616, 0.0
        %v717 = vmax.f32 %v681, 0.0
        %v718 = vmax.f32 %v619, 0.0
        %v719 = vmax.f32 %v684, 0.0
        %v720 = vmax.f32 %v622, 0.0
        %v721 = vmax.f32 %v687, 0.0
        %v722 = vmax.f32 %v625, 0.0
        %v723 = vmax.f32 %v690, 0.0
        %v724 = vld [vmem:[#allocation2] sm:$0xff]
        %v725 = vld [vmem:[#allocation2 + $0x8] sm:$0xff]
        %v726 = vld [vmem:[#allocation2 + $0x10] sm:$0xff]
        %v727 = vld [vmem:[#allocation2 + $0x18] sm:$0xff]
        %v728 = vld [vmem:[#allocation2 + $0x20] sm:$0xff]
        %v729 = vld [vmem:[#allocation2 + $0x28] sm:$0xff]
        %v730 = vld [vmem:[#allocation2 + $0x30] sm:$0xff]
        %v731 = vld [vmem:[#allocation2 + $0x38] sm:$0xff]
        %v732 = vld [vmem:[#allocation2 + $0x40] sm:$0xff]
        %v733 = vld [vmem:[#allocation2 + $0x48] sm:$0xff]
        %v734 = vld [vmem:[#allocation2 + $0x50] sm:$0xff]
        %v735 = vld [vmem:[#allocation2 + $0x58] sm:$0xff]
        %v736 = vld [vmem:[#allocation2 + $0x60] sm:$0xff]
        %v737 = vld [vmem:[#allocation2 + $0x68] sm:$0xff]
        %v738 = vld [vmem:[#allocation2 + $0x70] sm:$0xff]
        %v739 = vld [vmem:[#allocation2 + $0x78] sm:$0xff]
        %v740 = vld [vmem:[#allocation2 + $0x80] sm:$0xff]
        %v741 = vld [vmem:[#allocation2 + $0x88] sm:$0xff]
        %v742 = vld [vmem:[#allocation2 + $0x90] sm:$0xff]
        %v743 = vld [vmem:[#allocation2 + $0x98] sm:$0xff]
        %v744 = vld [vmem:[#allocation2 + $0xa0] sm:$0xff]
        %v745 = vld [vmem:[#allocation2 + $0xa8] sm:$0xff]
        %v746 = vld [vmem:[#allocation2 + $0xb0] sm:$0xff]
        %v747 = vld [vmem:[#allocation2 + $0xb8] sm:$0xff]
        %v748 = vld [vmem:[#allocation2 + $0xc0] sm:$0xff]
        %v749 = vld [vmem:[#allocation2 + $0xc8] sm:$0xff]
        %v750 = vld [vmem:[#allocation2 + $0xd0] sm:$0xff]
        %v751 = vld [vmem:[#allocation2 + $0xd8] sm:$0xff]
        %v752 = vld [vmem:[#allocation2 + $0xe0] sm:$0xff]
        %v753 = vld [vmem:[#allocation2 + $0xe8] sm:$0xff]
        %v754 = vld [vmem:[#allocation2 + $0xf0] sm:$0xff]
        %v755 = vld [vmem:[#allocation2 + $0xf8] sm:$0xff]
        %v756 = vld [vmem:[#allocation2 + $0x100] sm:$0xff]
        %v757 = vld [vmem:[#allocation2 + $0x108] sm:$0xff]
        %v758 = vld [vmem:[#allocation2 + $0x110] sm:$0xff]
        %v759 = vld [vmem:[#allocation2 + $0x118] sm:$0xff]
        %v760 = vld [vmem:[#allocation2 + $0x120] sm:$0xff]
        %v761 = vld [vmem:[#allocation2 + $0x128] sm:$0xff]
        %v762 = vld [vmem:[#allocation2 + $0x130] sm:$0xff]
        %v763 = vld [vmem:[#allocation2 + $0x138] sm:$0xff]
        %v764 = vld [vmem:[#allocation2 + $0x140] sm:$0xff]
        %v765 = vld [vmem:[#allocation2 + $0x148] sm:$0xff]
        %v766 = vld [vmem:[#allocation2 + $0x150] sm:$0xff]
        %v767 = vld [vmem:[#allocation2 + $0x158] sm:$0xff]
        %v768 = vld [vmem:[#allocation2 + $0x160] sm:$0xff]
        %v769 = vld [vmem:[#allocation2 + $0x168] sm:$0xff]
        %v770 = vld [vmem:[#allocation2 + $0x170] sm:$0xff]
        %v771 = vld [vmem:[#allocation2 + $0x178] sm:$0xff]
        %v772 = vld [vmem:[#allocation2 + $0x180] sm:$0xff]
        %v773 = vld [vmem:[#allocation2 + $0x188] sm:$0xff]
        %v774 = vld [vmem:[#allocation2 + $0x190] sm:$0xff]
        %v775 = vld [vmem:[#allocation2 + $0x198] sm:$0xff]
        %v776 = vld [vmem:[#allocation2 + $0x1a0] sm:$0xff]
        %v777 = vld [vmem:[#allocation2 + $0x1a8] sm:$0xff]
        %v778 = vld [vmem:[#allocation2 + $0x1b0] sm:$0xff]
        %v779 = vld [vmem:[#allocation2 + $0x1b8] sm:$0xff]
        %v780 = vld [vmem:[#allocation2 + $0x1c0] sm:$0xff]
        %v781 = vld [vmem:[#allocation2 + $0x1c8] sm:$0xff]
        %v782 = vld [vmem:[#allocation2 + $0x1d0] sm:$0xff]
        %v783 = vld [vmem:[#allocation2 + $0x1d8] sm:$0xff]
        %v784 = vld [vmem:[#allocation2 + $0x1e0] sm:$0xff]
        %v785 = vld [vmem:[#allocation2 + $0x1e8] sm:$0xff]
        %v786 = vld [vmem:[#allocation2 + $0x1f0] sm:$0xff]
        %v787 = vld [vmem:[#allocation2 + $0x1f8] sm:$0xff]
        %v788 = vld [vmem:[#allocation2 + $0x200] sm:$0xff]
        %v789 = vld [vmem:[#allocation2 + $0x208] sm:$0xff]
        %v790 = vld [vmem:[#allocation2 + $0x210] sm:$0xff]
        %v791 = vld [vmem:[#allocation2 + $0x218] sm:$0xff]
        %v792 = vld [vmem:[#allocation2 + $0x220] sm:$0xff]
        %v793 = vld [vmem:[#allocation2 + $0x228] sm:$0xff]
        %v794 = vld [vmem:[#allocation2 + $0x230] sm:$0xff]
        %v795 = vld [vmem:[#allocation2 + $0x238] sm:$0xff]
        %v796 = vld [vmem:[#allocation2 + $0x240] sm:$0xff]
        %v797 = vld [vmem:[#allocation2 + $0x248] sm:$0xff]
        %v798 = vld [vmem:[#allocation2 + $0x250] sm:$0xff]
        %v799 = vld [vmem:[#allocation2 + $0x258] sm:$0xff]
        %v800 = vld [vmem:[#allocation2 + $0x260] sm:$0xff]
        %v801 = vld [vmem:[#allocation2 + $0x268] sm:$0xff]
        %v802 = vld [vmem:[#allocation2 + $0x270] sm:$0xff]
        %v803 = vld [vmem:[#allocation2 + $0x278] sm:$0xff]
        %v804 = vld [vmem:[#allocation2 + $0x280] sm:$0xff]
        %v805 = vld [vmem:[#allocation2 + $0x288] sm:$0xff]
        %v806 = vld [vmem:[#allocation2 + $0x290] sm:$0xff]
        %v807 = vld [vmem:[#allocation2 + $0x298] sm:$0xff]
        %v808 = vld [vmem:[#allocation2 + $0x2a0] sm:$0xff]
        %v809 = vld [vmem:[#allocation2 + $0x2a8] sm:$0xff]
        %v810 = vld [vmem:[#allocation2 + $0x2b0] sm:$0xff]
        %v811 = vld [vmem:[#allocation2 + $0x2b8] sm:$0xff]
        %v812 = vld [vmem:[#allocation2 + $0x2c0] sm:$0xff]
        %v813 = vld [vmem:[#allocation2 + $0x2c8] sm:$0xff]
        %v814 = vld [vmem:[#allocation2 + $0x2d0] sm:$0xff]
        %v815 = vld [vmem:[#allocation2 + $0x2d8] sm:$0xff]
        %v816 = vld [vmem:[#allocation2 + $0x2e0] sm:$0xff]
        %v817 = vld [vmem:[#allocation2 + $0x2e8] sm:$0xff]
        %v818 = vld [vmem:[#allocation2 + $0x2f0] sm:$0xff]
        %v819 = vld [vmem:[#allocation2 + $0x2f8] sm:$0xff]
        %v820 = vld [vmem:[#allocation2 + $0x300] sm:$0xff]
        %v821 = vld [vmem:[#allocation2 + $0x308] sm:$0xff]
        %v822 = vld [vmem:[#allocation2 + $0x310] sm:$0xff]
        %v823 = vld [vmem:[#allocation2 + $0x318] sm:$0xff]
        %v824 = vld [vmem:[#allocation2 + $0x320] sm:$0xff]
        %v825 = vld [vmem:[#allocation2 + $0x328] sm:$0xff]
        %v826 = vld [vmem:[#allocation2 + $0x330] sm:$0xff]
        %v827 = vld [vmem:[#allocation2 + $0x338] sm:$0xff]
        %v828 = vld [vmem:[#allocation2 + $0x340] sm:$0xff]
        %v829 = vld [vmem:[#allocation2 + $0x348] sm:$0xff]
        %v830 = vld [vmem:[#allocation2 + $0x350] sm:$0xff]
        %v831 = vld [vmem:[#allocation2 + $0x358] sm:$0xff]
        %v832 = vld [vmem:[#allocation2 + $0x360] sm:$0xff]
        %v833 = vld [vmem:[#allocation2 + $0x368] sm:$0xff]
        %v834 = vld [vmem:[#allocation2 + $0x370] sm:$0xff]
        %v835 = vld [vmem:[#allocation2 + $0x378] sm:$0xff]
        %v836 = vld [vmem:[#allocation2 + $0x380] sm:$0xff]
        %v837 = vld [vmem:[#allocation2 + $0x388] sm:$0xff]
        %v838 = vld [vmem:[#allocation2 + $0x390] sm:$0xff]
        %v839 = vld [vmem:[#allocation2 + $0x398] sm:$0xff]
        %v840 = vld [vmem:[#allocation2 + $0x3a0] sm:$0xff]
        %v841 = vld [vmem:[#allocation2 + $0x3a8] sm:$0xff]
        %v842 = vld [vmem:[#allocation2 + $0x3b0] sm:$0xff]
        %v843 = vld [vmem:[#allocation2 + $0x3b8] sm:$0xff]
        %v844 = vld [vmem:[#allocation2 + $0x3c0] sm:$0xff]
        %v845 = vld [vmem:[#allocation2 + $0x3c8] sm:$0xff]
        %v846 = vld [vmem:[#allocation2 + $0x3d0] sm:$0xff]
        %v847 = vld [vmem:[#allocation2 + $0x3d8] sm:$0xff]
        %v848 = vld [vmem:[#allocation2 + $0x3e0] sm:$0xff]
        %v849 = vld [vmem:[#allocation2 + $0x3e8] sm:$0xff]
        %v850 = vld [vmem:[#allocation2 + $0x3f0] sm:$0xff]
        %v851 = vld [vmem:[#allocation2 + $0x3f8] sm:$0xff]
        %v852 = vld [vmem:[%s6] sm:$0xf]
        %v854 = vperm.slane %v852, 0
        %v855 = vperm.slane %v852, 1
        %v856 = vperm.slane %v852, 2
        %v857 = vperm.slane %v852, 3
        %862 = vmatpush.msra.mxu0 %v784
        %863 = vmatpush.msra.mxu0 %v780
        %864 = vmatpush.msra.mxu0 %v776
        %865 = vmatpush.msra.mxu0 %v772
        %866 = vmatpush.msra.mxu0 %v768
        %867 = vmatpush.msra.mxu0 %v764
        %868 = vmatpush.msra.mxu0 %v760
        %869 = vmatpush.msra.mxu0 %v756
        %870 = vmatpush.msra.mxu0 %v752
        %871 = vmatpush.msra.mxu0 %v748
        %872 = vmatpush.msra.mxu0 %v744
        %873 = vmatpush.msra.mxu0 %v740
        %874 = vmatpush.msra.mxu0 %v736
        %875 = vmatpush.msra.mxu0 %v732
        %876 = vmatpush.msra.mxu0 %v728
        %877 = vmatpush.msra.mxu0 %v724
        %878 = vmatmul.f32.gmra.mxu0 %v692
        %v879 = vpop.f32.mrf.mxu0
        %v880 = vadd.f32 %v854, %v879
        %881 = vmatmul.f32.gmra.mxu0 %v694
        %v882 = vpop.f32.mrf.mxu0
        %v883 = vadd.f32 %v854, %v882
        %884 = vmatmul.f32.gmra.mxu0 %v696
        %v885 = vpop.f32.mrf.mxu0
        %v886 = vadd.f32 %v854, %v885
        %887 = vmatmul.f32.gmra.mxu0 %v698
        %v888 = vpop.f32.mrf.mxu0
        %v889 = vadd.f32 %v854, %v888
        %890 = vmatmul.f32.gmra.mxu0 %v700
        %v891 = vpop.f32.mrf.mxu0
        %v892 = vadd.f32 %v854, %v891
        %893 = vmatmul.f32.gmra.mxu0 %v702
        %v894 = vpop.f32.mrf.mxu0
        %v895 = vadd.f32 %v854, %v894
        %896 = vmatmul.f32.gmra.mxu0 %v704
        %v897 = vpop.f32.mrf.mxu0
        %v898 = vadd.f32 %v854, %v897
        %899 = vmatmul.f32.gmra.mxu0 %v706
        %v900 = vpop.f32.mrf.mxu0
        %v901 = vadd.f32 %v854, %v900
        %902 = vmatmul.f32.gmra.mxu0 %v708
        %v903 = vpop.f32.mrf.mxu0
        %v904 = vadd.f32 %v854, %v903
        %905 = vmatmul.f32.gmra.mxu0 %v710
        %v906 = vpop.f32.mrf.mxu0
        %v907 = vadd.f32 %v854, %v906
        %908 = vmatmul.f32.gmra.mxu0 %v712
        %v909 = vpop.f32.mrf.mxu0
        %v910 = vadd.f32 %v854, %v909
        %911 = vmatmul.f32.gmra.mxu0 %v714
        %v912 = vpop.f32.mrf.mxu0
        %v913 = vadd.f32 %v854, %v912
        %914 = vmatmul.f32.gmra.mxu0 %v716
        %v915 = vpop.f32.mrf.mxu0
        %v916 = vadd.f32 %v854, %v915
        %917 = vmatmul.f32.gmra.mxu0 %v718
        %v918 = vpop.f32.mrf.mxu0
        %v919 = vadd.f32 %v854, %v918
        %920 = vmatmul.f32.gmra.mxu0 %v720
        %v921 = vpop.f32.mrf.mxu0
        %v922 = vadd.f32 %v854, %v921
        %923 = vmatmul.f32.gmra.mxu0 %v722
        %v924 = vpop.f32.mrf.mxu0
        %v925 = vadd.f32 %v854, %v924
        %926 = vdwg.mxu0
        %927 = vmatpush.msra.mxu0 %v848
        %928 = vmatpush.msra.mxu0 %v844
        %929 = vmatpush.msra.mxu0 %v840
        %930 = vmatpush.msra.mxu0 %v836
        %931 = vmatpush.msra.mxu0 %v832
        %932 = vmatpush.msra.mxu0 %v828
        %933 = vmatpush.msra.mxu0 %v824
        %934 = vmatpush.msra.mxu0 %v820
        %935 = vmatpush.msra.mxu0 %v816
        %936 = vmatpush.msra.mxu0 %v812
        %937 = vmatpush.msra.mxu0 %v808
        %938 = vmatpush.msra.mxu0 %v804
        %939 = vmatpush.msra.mxu0 %v800
        %940 = vmatpush.msra.mxu0 %v796
        %941 = vmatpush.msra.mxu0 %v792
        %942 = vmatpush.msra.mxu0 %v788
        %943 = vmatmul.f32.gmra.mxu0 %v693
        %v944 = vpop.f32.mrf.mxu0
        %v945 = vadd.f32 %v880, %v944
        %946 = vmatmul.f32.gmra.mxu0 %v695
        %v947 = vpop.f32.mrf.mxu0
        %v948 = vadd.f32 %v883, %v947
        %949 = vmatmul.f32.gmra.mxu0 %v697
        %v950 = vpop.f32.mrf.mxu0
        %v951 = vadd.f32 %v886, %v950
        %952 = vmatmul.f32.gmra.mxu0 %v699
        %v953 = vpop.f32.mrf.mxu0
        %v954 = vadd.f32 %v889, %v953
        %955 = vmatmul.f32.gmra.mxu0 %v701
        %v956 = vpop.f32.mrf.mxu0
        %v957 = vadd.f32 %v892, %v956
        %958 = vmatmul.f32.gmra.mxu0 %v703
        %v959 = vpop.f32.mrf.mxu0
        %v960 = vadd.f32 %v895, %v959
        %961 = vmatmul.f32.gmra.mxu0 %v705
        %v962 = vpop.f32.mrf.mxu0
        %v963 = vadd.f32 %v898, %v962
        %964 = vmatmul.f32.gmra.mxu0 %v707
        %v965 = vpop.f32.mrf.mxu0
        %v966 = vadd.f32 %v901, %v965
        %967 = vmatmul.f32.gmra.mxu0 %v709
        %v968 = vpop.f32.mrf.mxu0
        %v969 = vadd.f32 %v904, %v968
        %970 = vmatmul.f32.gmra.mxu0 %v711
        %v971 = vpop.f32.mrf.mxu0
        %v972 = vadd.f32 %v907, %v971
        %973 = vmatmul.f32.gmra.mxu0 %v713
        %v974 = vpop.f32.mrf.mxu0
        %v975 = vadd.f32 %v910, %v974
        %976 = vmatmul.f32.gmra.mxu0 %v715
        %v977 = vpop.f32.mrf.mxu0
        %v978 = vadd.f32 %v913, %v977
        %979 = vmatmul.f32.gmra.mxu0 %v717
        %v980 = vpop.f32.mrf.mxu0
        %v981 = vadd.f32 %v916, %v980
        %982 = vmatmul.f32.gmra.mxu0 %v719
        %v983 = vpop.f32.mrf.mxu0
        %v984 = vadd.f32 %v919, %v983
        %985 = vmatmul.f32.gmra.mxu0 %v721
        %v986 = vpop.f32.mrf.mxu0
        %v987 = vadd.f32 %v922, %v986
        %988 = vmatmul.f32.gmra.mxu0 %v723
        %v989 = vpop.f32.mrf.mxu0
        %v990 = vadd.f32 %v925, %v989
        %991 = vdwg.mxu0
        %992 = vmatpush.msra.mxu0 %v785
        %993 = vmatpush.msra.mxu0 %v781
        %994 = vmatpush.msra.mxu0 %v777
        %995 = vmatpush.msra.mxu0 %v773
        %996 = vmatpush.msra.mxu0 %v769
        %997 = vmatpush.msra.mxu0 %v765
        %998 = vmatpush.msra.mxu0 %v761
        %999 = vmatpush.msra.mxu0 %v757
        %1000 = vmatpush.msra.mxu0 %v753
        %1001 = vmatpush.msra.mxu0 %v749
        %1002 = vmatpush.msra.mxu0 %v745
        %1003 = vmatpush.msra.mxu0 %v741
        %1004 = vmatpush.msra.mxu0 %v737
        %1005 = vmatpush.msra.mxu0 %v733
        %1006 = vmatpush.msra.mxu0 %v729
        %1007 = vmatpush.msra.mxu0 %v725
        %1008 = vmatmul.f32.gmra.mxu0 %v692
        %v1009 = vpop.f32.mrf.mxu0
        %v1010 = vadd.f32 %v855, %v1009
        %1011 = vmatmul.f32.gmra.mxu0 %v694
        %v1012 = vpop.f32.mrf.mxu0
        %v1013 = vadd.f32 %v855, %v1012
        %1014 = vmatmul.f32.gmra.mxu0 %v696
        %v1015 = vpop.f32.mrf.mxu0
        %v1016 = vadd.f32 %v855, %v1015
        %1017 = vmatmul.f32.gmra.mxu0 %v698
        %v1018 = vpop.f32.mrf.mxu0
        %v1019 = vadd.f32 %v855, %v1018
        %1020 = vmatmul.f32.gmra.mxu0 %v700
        %v1021 = vpop.f32.mrf.mxu0
        %v1022 = vadd.f32 %v855, %v1021
        %1023 = vmatmul.f32.gmra.mxu0 %v702
        %v1024 = vpop.f32.mrf.mxu0
        %v1025 = vadd.f32 %v855, %v1024
        %1026 = vmatmul.f32.gmra.mxu0 %v704
        %v1027 = vpop.f32.mrf.mxu0
        %v1028 = vadd.f32 %v855, %v1027
        %1029 = vmatmul.f32.gmra.mxu0 %v706
        %v1030 = vpop.f32.mrf.mxu0
        %v1031 = vadd.f32 %v855, %v1030
        %1032 = vmatmul.f32.gmra.mxu0 %v708
        %v1033 = vpop.f32.mrf.mxu0
        %v1034 = vadd.f32 %v855, %v1033
        %1035 = vmatmul.f32.gmra.mxu0 %v710
        %v1036 = vpop.f32.mrf.mxu0
        %v1037 = vadd.f32 %v855, %v1036
        %1038 = vmatmul.f32.gmra.mxu0 %v712
        %v1039 = vpop.f32.mrf.mxu0
        %v1040 = vadd.f32 %v855, %v1039
        %1041 = vmatmul.f32.gmra.mxu0 %v714
        %v1042 = vpop.f32.mrf.mxu0
        %v1043 = vadd.f32 %v855, %v1042
        %1044 = vmatmul.f32.gmra.mxu0 %v716
        %v1045 = vpop.f32.mrf.mxu0
        %v1046 = vadd.f32 %v855, %v1045
        %1047 = vmatmul.f32.gmra.mxu0 %v718
        %v1048 = vpop.f32.mrf.mxu0
        %v1049 = vadd.f32 %v855, %v1048
        %1050 = vmatmul.f32.gmra.mxu0 %v720
        %v1051 = vpop.f32.mrf.mxu0
        %v1052 = vadd.f32 %v855, %v1051
        %1053 = vmatmul.f32.gmra.mxu0 %v722
        %v1054 = vpop.f32.mrf.mxu0
        %v1055 = vadd.f32 %v855, %v1054
        %1056 = vdwg.mxu0
        %1057 = vmatpush.msra.mxu0 %v849
        %1058 = vmatpush.msra.mxu0 %v845
        %1059 = vmatpush.msra.mxu0 %v841
        %1060 = vmatpush.msra.mxu0 %v837
        %1061 = vmatpush.msra.mxu0 %v833
        %1062 = vmatpush.msra.mxu0 %v829
        %1063 = vmatpush.msra.mxu0 %v825
        %1064 = vmatpush.msra.mxu0 %v821
        %1065 = vmatpush.msra.mxu0 %v817
        %1066 = vmatpush.msra.mxu0 %v813
        %1067 = vmatpush.msra.mxu0 %v809
        %1068 = vmatpush.msra.mxu0 %v805
        %1069 = vmatpush.msra.mxu0 %v801
        %1070 = vmatpush.msra.mxu0 %v797
        %1071 = vmatpush.msra.mxu0 %v793
        %1072 = vmatpush.msra.mxu0 %v789
        %1073 = vmatmul.f32.gmra.mxu0 %v693
        %v1074 = vpop.f32.mrf.mxu0
        %v1075 = vadd.f32 %v1010, %v1074
        %1076 = vmatmul.f32.gmra.mxu0 %v695
        %v1077 = vpop.f32.mrf.mxu0
        %v1078 = vadd.f32 %v1013, %v1077
        %1079 = vmatmul.f32.gmra.mxu0 %v697
        %v1080 = vpop.f32.mrf.mxu0
        %v1081 = vadd.f32 %v1016, %v1080
        %1082 = vmatmul.f32.gmra.mxu0 %v699
        %v1083 = vpop.f32.mrf.mxu0
        %v1084 = vadd.f32 %v1019, %v1083
        %1085 = vmatmul.f32.gmra.mxu0 %v701
        %v1086 = vpop.f32.mrf.mxu0
        %v1087 = vadd.f32 %v1022, %v1086
        %1088 = vmatmul.f32.gmra.mxu0 %v703
        %v1089 = vpop.f32.mrf.mxu0
        %v1090 = vadd.f32 %v1025, %v1089
        %1091 = vmatmul.f32.gmra.mxu0 %v705
        %v1092 = vpop.f32.mrf.mxu0
        %v1093 = vadd.f32 %v1028, %v1092
        %1094 = vmatmul.f32.gmra.mxu0 %v707
        %v1095 = vpop.f32.mrf.mxu0
        %v1096 = vadd.f32 %v1031, %v1095
        %1097 = vmatmul.f32.gmra.mxu0 %v709
        %v1098 = vpop.f32.mrf.mxu0
        %v1099 = vadd.f32 %v1034, %v1098
        %1100 = vmatmul.f32.gmra.mxu0 %v711
        %v1101 = vpop.f32.mrf.mxu0
        %v1102 = vadd.f32 %v1037, %v1101
        %1103 = vmatmul.f32.gmra.mxu0 %v713
        %v1104 = vpop.f32.mrf.mxu0
        %v1105 = vadd.f32 %v1040, %v1104
        %1106 = vmatmul.f32.gmra.mxu0 %v715
        %v1107 = vpop.f32.mrf.mxu0
        %v1108 = vadd.f32 %v1043, %v1107
        %1109 = vmatmul.f32.gmra.mxu0 %v717
        %v1110 = vpop.f32.mrf.mxu0
        %v1111 = vadd.f32 %v1046, %v1110
        %1112 = vmatmul.f32.gmra.mxu0 %v719
        %v1113 = vpop.f32.mrf.mxu0
        %v1114 = vadd.f32 %v1049, %v1113
        %1115 = vmatmul.f32.gmra.mxu0 %v721
        %v1116 = vpop.f32.mrf.mxu0
        %v1117 = vadd.f32 %v1052, %v1116
        %1118 = vmatmul.f32.gmra.mxu0 %v723
        %v1119 = vpop.f32.mrf.mxu0
        %v1120 = vadd.f32 %v1055, %v1119
        %1121 = vdwg.mxu0
        %1122 = vmatpush.msra.mxu0 %v786
        %1123 = vmatpush.msra.mxu0 %v782
        %1124 = vmatpush.msra.mxu0 %v778
        %1125 = vmatpush.msra.mxu0 %v774
        %1126 = vmatpush.msra.mxu0 %v770
        %1127 = vmatpush.msra.mxu0 %v766
        %1128 = vmatpush.msra.mxu0 %v762
        %1129 = vmatpush.msra.mxu0 %v758
        %1130 = vmatpush.msra.mxu0 %v754
        %1131 = vmatpush.msra.mxu0 %v750
        %1132 = vmatpush.msra.mxu0 %v746
        %1133 = vmatpush.msra.mxu0 %v742
        %1134 = vmatpush.msra.mxu0 %v738
        %1135 = vmatpush.msra.mxu0 %v734
        %1136 = vmatpush.msra.mxu0 %v730
        %1137 = vmatpush.msra.mxu0 %v726
        %1138 = vmatmul.f32.gmra.mxu0 %v692
        %v1139 = vpop.f32.mrf.mxu0
        %v1140 = vadd.f32 %v856, %v1139
        %1141 = vmatmul.f32.gmra.mxu0 %v694
        %v1142 = vpop.f32.mrf.mxu0
        %v1143 = vadd.f32 %v856, %v1142
        %1144 = vmatmul.f32.gmra.mxu0 %v696
        %v1145 = vpop.f32.mrf.mxu0
        %v1146 = vadd.f32 %v856, %v1145
        %1147 = vmatmul.f32.gmra.mxu0 %v698
        %v1148 = vpop.f32.mrf.mxu0
        %v1149 = vadd.f32 %v856, %v1148
        %1150 = vmatmul.f32.gmra.mxu0 %v700
        %v1151 = vpop.f32.mrf.mxu0
        %v1152 = vadd.f32 %v856, %v1151
        %1153 = vmatmul.f32.gmra.mxu0 %v702
        %v1154 = vpop.f32.mrf.mxu0
        %v1155 = vadd.f32 %v856, %v1154
        %1156 = vmatmul.f32.gmra.mxu0 %v704
        %v1157 = vpop.f32.mrf.mxu0
        %v1158 = vadd.f32 %v856, %v1157
        %1159 = vmatmul.f32.gmra.mxu0 %v706
        %v1160 = vpop.f32.mrf.mxu0
        %v1161 = vadd.f32 %v856, %v1160
        %1162 = vmatmul.f32.gmra.mxu0 %v708
        %v1163 = vpop.f32.mrf.mxu0
        %v1164 = vadd.f32 %v856, %v1163
        %1165 = vmatmul.f32.gmra.mxu0 %v710
        %v1166 = vpop.f32.mrf.mxu0
        %v1167 = vadd.f32 %v856, %v1166
        %1168 = vmatmul.f32.gmra.mxu0 %v712
        %v1169 = vpop.f32.mrf.mxu0
        %v1170 = vadd.f32 %v856, %v1169
        %1171 = vmatmul.f32.gmra.mxu0 %v714
        %v1172 = vpop.f32.mrf.mxu0
        %v1173 = vadd.f32 %v856, %v1172
        %1174 = vmatmul.f32.gmra.mxu0 %v716
        %v1175 = vpop.f32.mrf.mxu0
        %v1176 = vadd.f32 %v856, %v1175
        %1177 = vmatmul.f32.gmra.mxu0 %v718
        %v1178 = vpop.f32.mrf.mxu0
        %v1179 = vadd.f32 %v856, %v1178
        %1180 = vmatmul.f32.gmra.mxu0 %v720
        %v1181 = vpop.f32.mrf.mxu0
        %v1182 = vadd.f32 %v856, %v1181
        %1183 = vmatmul.f32.gmra.mxu0 %v722
        %v1184 = vpop.f32.mrf.mxu0
        %v1185 = vadd.f32 %v856, %v1184
        %1186 = vdwg.mxu0
        %1187 = vmatpush.msra.mxu0 %v850
        %1188 = vmatpush.msra.mxu0 %v846
        %1189 = vmatpush.msra.mxu0 %v842
        %1190 = vmatpush.msra.mxu0 %v838
        %1191 = vmatpush.msra.mxu0 %v834
        %1192 = vmatpush.msra.mxu0 %v830
        %1193 = vmatpush.msra.mxu0 %v826
        %1194 = vmatpush.msra.mxu0 %v822
        %1195 = vmatpush.msra.mxu0 %v818
        %1196 = vmatpush.msra.mxu0 %v814
        %1197 = vmatpush.msra.mxu0 %v810
        %1198 = vmatpush.msra.mxu0 %v806
        %1199 = vmatpush.msra.mxu0 %v802
        %1200 = vmatpush.msra.mxu0 %v798
        %1201 = vmatpush.msra.mxu0 %v794
        %1202 = vmatpush.msra.mxu0 %v790
        %1203 = vmatmul.f32.gmra.mxu0 %v693
        %v1204 = vpop.f32.mrf.mxu0
        %v1205 = vadd.f32 %v1140, %v1204
        %1206 = vmatmul.f32.gmra.mxu0 %v695
        %v1207 = vpop.f32.mrf.mxu0
        %v1208 = vadd.f32 %v1143, %v1207
        %1209 = vmatmul.f32.gmra.mxu0 %v697
        %v1210 = vpop.f32.mrf.mxu0
        %v1211 = vadd.f32 %v1146, %v1210
        %1212 = vmatmul.f32.gmra.mxu0 %v699
        %v1213 = vpop.f32.mrf.mxu0
        %v1214 = vadd.f32 %v1149, %v1213
        %1215 = vmatmul.f32.gmra.mxu0 %v701
        %v1216 = vpop.f32.mrf.mxu0
        %v1217 = vadd.f32 %v1152, %v1216
        %1218 = vmatmul.f32.gmra.mxu0 %v703
        %v1219 = vpop.f32.mrf.mxu0
        %v1220 = vadd.f32 %v1155, %v1219
        %1221 = vmatmul.f32.gmra.mxu0 %v705
        %v1222 = vpop.f32.mrf.mxu0
        %v1223 = vadd.f32 %v1158, %v1222
        %1224 = vmatmul.f32.gmra.mxu0 %v707
        %v1225 = vpop.f32.mrf.mxu0
        %v1226 = vadd.f32 %v1161, %v1225
        %1227 = vmatmul.f32.gmra.mxu0 %v709
        %v1228 = vpop.f32.mrf.mxu0
        %v1229 = vadd.f32 %v1164, %v1228
        %1230 = vmatmul.f32.gmra.mxu0 %v711
        %v1231 = vpop.f32.mrf.mxu0
        %v1232 = vadd.f32 %v1167, %v1231
        %1233 = vmatmul.f32.gmra.mxu0 %v713
        %v1234 = vpop.f32.mrf.mxu0
        %v1235 = vadd.f32 %v1170, %v1234
        %1236 = vmatmul.f32.gmra.mxu0 %v715
        %v1237 = vpop.f32.mrf.mxu0
        %v1238 = vadd.f32 %v1173, %v1237
        %1239 = vmatmul.f32.gmra.mxu0 %v717
        %v1240 = vpop.f32.mrf.mxu0
        %v1241 = vadd.f32 %v1176, %v1240
        %1242 = vmatmul.f32.gmra.mxu0 %v719
        %v1243 = vpop.f32.mrf.mxu0
        %v1244 = vadd.f32 %v1179, %v1243
        %1245 = vmatmul.f32.gmra.mxu0 %v721
        %v1246 = vpop.f32.mrf.mxu0
        %v1247 = vadd.f32 %v1182, %v1246
        %1248 = vmatmul.f32.gmra.mxu0 %v723
        %v1249 = vpop.f32.mrf.mxu0
        %v1250 = vadd.f32 %v1185, %v1249
        %1251 = vdwg.mxu0
        %1252 = vmatpush.msra.mxu0 %v787
        %1253 = vmatpush.msra.mxu0 %v783
        %1254 = vmatpush.msra.mxu0 %v779
        %1255 = vmatpush.msra.mxu0 %v775
        %1256 = vmatpush.msra.mxu0 %v771
        %1257 = vmatpush.msra.mxu0 %v767
        %1258 = vmatpush.msra.mxu0 %v763
        %1259 = vmatpush.msra.mxu0 %v759
        %1260 = vmatpush.msra.mxu0 %v755
        %1261 = vmatpush.msra.mxu0 %v751
        %1262 = vmatpush.msra.mxu0 %v747
        %1263 = vmatpush.msra.mxu0 %v743
        %1264 = vmatpush.msra.mxu0 %v739
        %1265 = vmatpush.msra.mxu0 %v735
        %1266 = vmatpush.msra.mxu0 %v731
        %1267 = vmatpush.msra.mxu0 %v727
        %1268 = vmatmul.f32.gmra.mxu0 %v692
        %v1269 = vpop.f32.mrf.mxu0
        %v1270 = vadd.f32 %v857, %v1269
        %1271 = vmatmul.f32.gmra.mxu0 %v694
        %v1272 = vpop.f32.mrf.mxu0
        %v1273 = vadd.f32 %v857, %v1272
        %1274 = vmatmul.f32.gmra.mxu0 %v696
        %v1275 = vpop.f32.mrf.mxu0
        %v1276 = vadd.f32 %v857, %v1275
        %1277 = vmatmul.f32.gmra.mxu0 %v698
        %v1278 = vpop.f32.mrf.mxu0
        %v1279 = vadd.f32 %v857, %v1278
        %1280 = vmatmul.f32.gmra.mxu0 %v700
        %v1281 = vpop.f32.mrf.mxu0
        %v1282 = vadd.f32 %v857, %v1281
        %1283 = vmatmul.f32.gmra.mxu0 %v702
        %v1284 = vpop.f32.mrf.mxu0
        %v1285 = vadd.f32 %v857, %v1284
        %1286 = vmatmul.f32.gmra.mxu0 %v704
        %v1287 = vpop.f32.mrf.mxu0
        %v1288 = vadd.f32 %v857, %v1287
        %1289 = vmatmul.f32.gmra.mxu0 %v706
        %v1290 = vpop.f32.mrf.mxu0
        %v1291 = vadd.f32 %v857, %v1290
        %1292 = vmatmul.f32.gmra.mxu0 %v708
        %v1293 = vpop.f32.mrf.mxu0
        %v1294 = vadd.f32 %v857, %v1293
        %1295 = vmatmul.f32.gmra.mxu0 %v710
        %v1296 = vpop.f32.mrf.mxu0
        %v1297 = vadd.f32 %v857, %v1296
        %1298 = vmatmul.f32.gmra.mxu0 %v712
        %v1299 = vpop.f32.mrf.mxu0
        %v1300 = vadd.f32 %v857, %v1299
        %1301 = vmatmul.f32.gmra.mxu0 %v714
        %v1302 = vpop.f32.mrf.mxu0
        %v1303 = vadd.f32 %v857, %v1302
        %1304 = vmatmul.f32.gmra.mxu0 %v716
        %v1305 = vpop.f32.mrf.mxu0
        %v1306 = vadd.f32 %v857, %v1305
        %1307 = vmatmul.f32.gmra.mxu0 %v718
        %v1308 = vpop.f32.mrf.mxu0
        %v1309 = vadd.f32 %v857, %v1308
        %1310 = vmatmul.f32.gmra.mxu0 %v720
        %v1311 = vpop.f32.mrf.mxu0
        %v1312 = vadd.f32 %v857, %v1311
        %1313 = vmatmul.f32.gmra.mxu0 %v722
        %v1314 = vpop.f32.mrf.mxu0
        %v1315 = vadd.f32 %v857, %v1314
        %1316 = vdwg.mxu0
        %1317 = vmatpush.msra.mxu0 %v851
        %1318 = vmatpush.msra.mxu0 %v847
        %1319 = vmatpush.msra.mxu0 %v843
        %1320 = vmatpush.msra.mxu0 %v839
        %1321 = vmatpush.msra.mxu0 %v835
        %1322 = vmatpush.msra.mxu0 %v831
        %1323 = vmatpush.msra.mxu0 %v827
        %1324 = vmatpush.msra.mxu0 %v823
        %1325 = vmatpush.msra.mxu0 %v819
        %1326 = vmatpush.msra.mxu0 %v815
        %1327 = vmatpush.msra.mxu0 %v811
        %1328 = vmatpush.msra.mxu0 %v807
        %1329 = vmatpush.msra.mxu0 %v803
        %1330 = vmatpush.msra.mxu0 %v799
        %1331 = vmatpush.msra.mxu0 %v795
        %1332 = vmatpush.msra.mxu0 %v791
        %1333 = vmatmul.f32.gmra.mxu0 %v693
        %v1334 = vpop.f32.mrf.mxu0
        %v1335 = vadd.f32 %v1270, %v1334
        %1336 = vmatmul.f32.gmra.mxu0 %v695
        %v1337 = vpop.f32.mrf.mxu0
        %v1338 = vadd.f32 %v1273, %v1337
        %1339 = vmatmul.f32.gmra.mxu0 %v697
        %v1340 = vpop.f32.mrf.mxu0
        %v1341 = vadd.f32 %v1276, %v1340
        %1342 = vmatmul.f32.gmra.mxu0 %v699
        %v1343 = vpop.f32.mrf.mxu0
        %v1344 = vadd.f32 %v1279, %v1343
        %1345 = vmatmul.f32.gmra.mxu0 %v701
        %v1346 = vpop.f32.mrf.mxu0
        %v1347 = vadd.f32 %v1282, %v1346
        %1348 = vmatmul.f32.gmra.mxu0 %v703
        %v1349 = vpop.f32.mrf.mxu0
        %v1350 = vadd.f32 %v1285, %v1349
        %1351 = vmatmul.f32.gmra.mxu0 %v705
        %v1352 = vpop.f32.mrf.mxu0
        %v1353 = vadd.f32 %v1288, %v1352
        %1354 = vmatmul.f32.gmra.mxu0 %v707
        %v1355 = vpop.f32.mrf.mxu0
        %v1356 = vadd.f32 %v1291, %v1355
        %1357 = vmatmul.f32.gmra.mxu0 %v709
        %v1358 = vpop.f32.mrf.mxu0
        %v1359 = vadd.f32 %v1294, %v1358
        %1360 = vmatmul.f32.gmra.mxu0 %v711
        %v1361 = vpop.f32.mrf.mxu0
        %v1362 = vadd.f32 %v1297, %v1361
        %1363 = vmatmul.f32.gmra.mxu0 %v713
        %v1364 = vpop.f32.mrf.mxu0
        %v1365 = vadd.f32 %v1300, %v1364
        %1366 = vmatmul.f32.gmra.mxu0 %v715
        %v1367 = vpop.f32.mrf.mxu0
        %v1368 = vadd.f32 %v1303, %v1367
        %1369 = vmatmul.f32.gmra.mxu0 %v717
        %v1370 = vpop.f32.mrf.mxu0
        %v1371 = vadd.f32 %v1306, %v1370
        %1372 = vmatmul.f32.gmra.mxu0 %v719
        %v1373 = vpop.f32.mrf.mxu0
        %v1374 = vadd.f32 %v1309, %v1373
        %1375 = vmatmul.f32.gmra.mxu0 %v721
        %v1376 = vpop.f32.mrf.mxu0
        %v1377 = vadd.f32 %v1312, %v1376
        %1378 = vmatmul.f32.gmra.mxu0 %v723
        %v1379 = vpop.f32.mrf.mxu0
        %v1380 = vadd.f32 %v1315, %v1379
        %1381 = vdwg.mxu0
        %v1382 = vmax.f32 %v945, 0.0
        %v1383 = vmax.f32 %v1075, 0.0
        %v1384 = vmax.f32 %v1205, 0.0
        %v1385 = vmax.f32 %v1335, 0.0
        %v1386 = vmax.f32 %v948, 0.0
        %v1387 = vmax.f32 %v1078, 0.0
        %v1388 = vmax.f32 %v1208, 0.0
        %v1389 = vmax.f32 %v1338, 0.0
        %v1390 = vmax.f32 %v951, 0.0
        %v1391 = vmax.f32 %v1081, 0.0
        %v1392 = vmax.f32 %v1211, 0.0
        %v1393 = vmax.f32 %v1341, 0.0
        %v1394 = vmax.f32 %v954, 0.0
        %v1395 = vmax.f32 %v1084, 0.0
        %v1396 = vmax.f32 %v1214, 0.0
        %v1397 = vmax.f32 %v1344, 0.0
        %v1398 = vmax.f32 %v957, 0.0
        %v1399 = vmax.f32 %v1087, 0.0
        %v1400 = vmax.f32 %v1217, 0.0
        %v1401 = vmax.f32 %v1347, 0.0
        %v1402 = vmax.f32 %v960, 0.0
        %v1403 = vmax.f32 %v1090, 0.0
        %v1404 = vmax.f32 %v1220, 0.0
        %v1405 = vmax.f32 %v1350, 0.0
        %v1406 = vmax.f32 %v963, 0.0
        %v1407 = vmax.f32 %v1093, 0.0
        %v1408 = vmax.f32 %v1223, 0.0
        %v1409 = vmax.f32 %v1353, 0.0
        %v1410 = vmax.f32 %v966, 0.0
        %v1411 = vmax.f32 %v1096, 0.0
        %v1412 = vmax.f32 %v1226, 0.0
        %v1413 = vmax.f32 %v1356, 0.0
        %v1414 = vmax.f32 %v969, 0.0
        %v1415 = vmax.f32 %v1099, 0.0
        %v1416 = vmax.f32 %v1229, 0.0
        %v1417 = vmax.f32 %v1359, 0.0
        %v1418 = vmax.f32 %v972, 0.0
        %v1419 = vmax.f32 %v1102, 0.0
        %v1420 = vmax.f32 %v1232, 0.0
        %v1421 = vmax.f32 %v1362, 0.0
        %v1422 = vmax.f32 %v975, 0.0
        %v1423 = vmax.f32 %v1105, 0.0
        %v1424 = vmax.f32 %v1235, 0.0
        %v1425 = vmax.f32 %v1365, 0.0
        %v1426 = vmax.f32 %v978, 0.0
        %v1427 = vmax.f32 %v1108, 0.0
        %v1428 = vmax.f32 %v1238, 0.0
        %v1429 = vmax.f32 %v1368, 0.0
        %v1430 = vmax.f32 %v981, 0.0
        %v1431 = vmax.f32 %v1111, 0.0
        %v1432 = vmax.f32 %v1241, 0.0
        %v1433 = vmax.f32 %v1371, 0.0
        %v1434 = vmax.f32 %v984, 0.0
        %v1435 = vmax.f32 %v1114, 0.0
        %v1436 = vmax.f32 %v1244, 0.0
        %v1437 = vmax.f32 %v1374, 0.0
        %v1438 = vmax.f32 %v987, 0.0
        %v1439 = vmax.f32 %v1117, 0.0
        %v1440 = vmax.f32 %v1247, 0.0
        %v1441 = vmax.f32 %v1377, 0.0
        %v1442 = vmax.f32 %v990, 0.0
        %v1443 = vmax.f32 %v1120, 0.0
        %v1444 = vmax.f32 %v1250, 0.0
        %v1445 = vmax.f32 %v1380, 0.0
        %v1446 = vld [vmem:[#allocation4] sm:$0xff]
        %v1447 = vld [vmem:[#allocation4 + $0x8] sm:$0xff]
        %v1448 = vld [vmem:[#allocation4 + $0x10] sm:$0xff]
        %v1449 = vld [vmem:[#allocation4 + $0x18] sm:$0xff]
        %v1450 = vld [vmem:[#allocation4 + $0x20] sm:$0xff]
        %v1451 = vld [vmem:[#allocation4 + $0x28] sm:$0xff]
        %v1452 = vld [vmem:[#allocation4 + $0x30] sm:$0xff]
        %v1453 = vld [vmem:[#allocation4 + $0x38] sm:$0xff]
        %v1454 = vld [vmem:[#allocation4 + $0x40] sm:$0xff]
        %v1455 = vld [vmem:[#allocation4 + $0x48] sm:$0xff]
        %v1456 = vld [vmem:[#allocation4 + $0x50] sm:$0xff]
        %v1457 = vld [vmem:[#allocation4 + $0x58] sm:$0xff]
        %v1458 = vld [vmem:[#allocation4 + $0x60] sm:$0xff]
        %v1459 = vld [vmem:[#allocation4 + $0x68] sm:$0xff]
        %v1460 = vld [vmem:[#allocation4 + $0x70] sm:$0xff]
        %v1461 = vld [vmem:[#allocation4 + $0x78] sm:$0xff]
        %v1462 = vld [vmem:[#allocation4 + $0x80] sm:$0xff]
        %v1463 = vld [vmem:[#allocation4 + $0x88] sm:$0xff]
        %v1464 = vld [vmem:[#allocation4 + $0x90] sm:$0xff]
        %v1465 = vld [vmem:[#allocation4 + $0x98] sm:$0xff]
        %v1466 = vld [vmem:[#allocation4 + $0xa0] sm:$0xff]
        %v1467 = vld [vmem:[#allocation4 + $0xa8] sm:$0xff]
        %v1468 = vld [vmem:[#allocation4 + $0xb0] sm:$0xff]
        %v1469 = vld [vmem:[#allocation4 + $0xb8] sm:$0xff]
        %v1470 = vld [vmem:[#allocation4 + $0xc0] sm:$0xff]
        %v1471 = vld [vmem:[#allocation4 + $0xc8] sm:$0xff]
        %v1472 = vld [vmem:[#allocation4 + $0xd0] sm:$0xff]
        %v1473 = vld [vmem:[#allocation4 + $0xd8] sm:$0xff]
        %v1474 = vld [vmem:[#allocation4 + $0xe0] sm:$0xff]
        %v1475 = vld [vmem:[#allocation4 + $0xe8] sm:$0xff]
        %v1476 = vld [vmem:[#allocation4 + $0xf0] sm:$0xff]
        %v1477 = vld [vmem:[#allocation4 + $0xf8] sm:$0xff]
        %v1478 = vld [vmem:[#allocation4 + $0x100] sm:$0xff]
        %v1479 = vld [vmem:[#allocation4 + $0x108] sm:$0xff]
        %v1480 = vld [vmem:[#allocation4 + $0x110] sm:$0xff]
        %v1481 = vld [vmem:[#allocation4 + $0x118] sm:$0xff]
        %v1482 = vld [vmem:[#allocation4 + $0x120] sm:$0xff]
        %v1483 = vld [vmem:[#allocation4 + $0x128] sm:$0xff]
        %v1484 = vld [vmem:[#allocation4 + $0x130] sm:$0xff]
        %v1485 = vld [vmem:[#allocation4 + $0x138] sm:$0xff]
        %v1486 = vld [vmem:[#allocation4 + $0x140] sm:$0xff]
        %v1487 = vld [vmem:[#allocation4 + $0x148] sm:$0xff]
        %v1488 = vld [vmem:[#allocation4 + $0x150] sm:$0xff]
        %v1489 = vld [vmem:[#allocation4 + $0x158] sm:$0xff]
        %v1490 = vld [vmem:[#allocation4 + $0x160] sm:$0xff]
        %v1491 = vld [vmem:[#allocation4 + $0x168] sm:$0xff]
        %v1492 = vld [vmem:[#allocation4 + $0x170] sm:$0xff]
        %v1493 = vld [vmem:[#allocation4 + $0x178] sm:$0xff]
        %v1494 = vld [vmem:[#allocation4 + $0x180] sm:$0xff]
        %v1495 = vld [vmem:[#allocation4 + $0x188] sm:$0xff]
        %v1496 = vld [vmem:[#allocation4 + $0x190] sm:$0xff]
        %v1497 = vld [vmem:[#allocation4 + $0x198] sm:$0xff]
        %v1498 = vld [vmem:[#allocation4 + $0x1a0] sm:$0xff]
        %v1499 = vld [vmem:[#allocation4 + $0x1a8] sm:$0xff]
        %v1500 = vld [vmem:[#allocation4 + $0x1b0] sm:$0xff]
        %v1501 = vld [vmem:[#allocation4 + $0x1b8] sm:$0xff]
        %v1502 = vld [vmem:[#allocation4 + $0x1c0] sm:$0xff]
        %v1503 = vld [vmem:[#allocation4 + $0x1c8] sm:$0xff]
        %v1504 = vld [vmem:[#allocation4 + $0x1d0] sm:$0xff]
        %v1505 = vld [vmem:[#allocation4 + $0x1d8] sm:$0xff]
        %v1506 = vld [vmem:[#allocation4 + $0x1e0] sm:$0xff]
        %v1507 = vld [vmem:[#allocation4 + $0x1e8] sm:$0xff]
        %v1508 = vld [vmem:[#allocation4 + $0x1f0] sm:$0xff]
        %v1509 = vld [vmem:[#allocation4 + $0x1f8] sm:$0xff]
        %v1510 = vld [vmem:[%s8] sm:$0x1]
        %v1512 = vperm.slane %v1510, 0
        %1514 = vmatpush.msra.mxu0 %v1461
        %1515 = vmatpush.msra.mxu0 %v1460
        %1516 = vmatpush.msra.mxu0 %v1459
        %1517 = vmatpush.msra.mxu0 %v1458
        %1518 = vmatpush.msra.mxu0 %v1457
        %1519 = vmatpush.msra.mxu0 %v1456
        %1520 = vmatpush.msra.mxu0 %v1455
        %1521 = vmatpush.msra.mxu0 %v1454
        %1522 = vmatpush.msra.mxu0 %v1453
        %1523 = vmatpush.msra.mxu0 %v1452
        %1524 = vmatpush.msra.mxu0 %v1451
        %1525 = vmatpush.msra.mxu0 %v1450
        %1526 = vmatpush.msra.mxu0 %v1449
        %1527 = vmatpush.msra.mxu0 %v1448
        %1528 = vmatpush.msra.mxu0 %v1447
        %1529 = vmatpush.msra.mxu0 %v1446
        %1530 = vmatmul.f32.gmra.mxu0 %v1382
        %v1531 = vpop.f32.mrf.mxu0
        %v1532 = vadd.f32 %v1512, %v1531
        %1533 = vmatmul.f32.gmra.mxu0 %v1386
        %v1534 = vpop.f32.mrf.mxu0
        %v1535 = vadd.f32 %v1512, %v1534
        %1536 = vmatmul.f32.gmra.mxu0 %v1390
        %v1537 = vpop.f32.mrf.mxu0
        %v1538 = vadd.f32 %v1512, %v1537
        %1539 = vmatmul.f32.gmra.mxu0 %v1394
        %v1540 = vpop.f32.mrf.mxu0
        %v1541 = vadd.f32 %v1512, %v1540
        %1542 = vmatmul.f32.gmra.mxu0 %v1398
        %v1543 = vpop.f32.mrf.mxu0
        %v1544 = vadd.f32 %v1512, %v1543
        %1545 = vmatmul.f32.gmra.mxu0 %v1402
        %v1546 = vpop.f32.mrf.mxu0
        %v1547 = vadd.f32 %v1512, %v1546
        %1548 = vmatmul.f32.gmra.mxu0 %v1406
        %v1549 = vpop.f32.mrf.mxu0
        %v1550 = vadd.f32 %v1512, %v1549
        %1551 = vmatmul.f32.gmra.mxu0 %v1410
        %v1552 = vpop.f32.mrf.mxu0
        %v1553 = vadd.f32 %v1512, %v1552
        %1554 = vmatmul.f32.gmra.mxu0 %v1414
        %v1555 = vpop.f32.mrf.mxu0
        %v1556 = vadd.f32 %v1512, %v1555
        %1557 = vmatmul.f32.gmra.mxu0 %v1418
        %v1558 = vpop.f32.mrf.mxu0
        %v1559 = vadd.f32 %v1512, %v1558
        %1560 = vmatmul.f32.gmra.mxu0 %v1422
        %v1561 = vpop.f32.mrf.mxu0
        %v1562 = vadd.f32 %v1512, %v1561
        %1563 = vmatmul.f32.gmra.mxu0 %v1426
        %v1564 = vpop.f32.mrf.mxu0
        %v1565 = vadd.f32 %v1512, %v1564
        %1566 = vmatmul.f32.gmra.mxu0 %v1430
        %v1567 = vpop.f32.mrf.mxu0
        %v1568 = vadd.f32 %v1512, %v1567
        %1569 = vmatmul.f32.gmra.mxu0 %v1434
        %v1570 = vpop.f32.mrf.mxu0
        %v1571 = vadd.f32 %v1512, %v1570
        %1572 = vmatmul.f32.gmra.mxu0 %v1438
        %v1573 = vpop.f32.mrf.mxu0
        %v1574 = vadd.f32 %v1512, %v1573
        %1575 = vmatmul.f32.gmra.mxu0 %v1442
        %v1576 = vpop.f32.mrf.mxu0
        %v1577 = vadd.f32 %v1512, %v1576
        %1578 = vdwg.mxu0
        %1579 = vmatpush.msra.mxu0 %v1477
        %1580 = vmatpush.msra.mxu0 %v1476
        %1581 = vmatpush.msra.mxu0 %v1475
        %1582 = vmatpush.msra.mxu0 %v1474
        %1583 = vmatpush.msra.mxu0 %v1473
        %1584 = vmatpush.msra.mxu0 %v1472
        %1585 = vmatpush.msra.mxu0 %v1471
        %1586 = vmatpush.msra.mxu0 %v1470
        %1587 = vmatpush.msra.mxu0 %v1469
        %1588 = vmatpush.msra.mxu0 %v1468
        %1589 = vmatpush.msra.mxu0 %v1467
        %1590 = vmatpush.msra.mxu0 %v1466
        %1591 = vmatpush.msra.mxu0 %v1465
        %1592 = vmatpush.msra.mxu0 %v1464
        %1593 = vmatpush.msra.mxu0 %v1463
        %1594 = vmatpush.msra.mxu0 %v1462
        %1595 = vmatmul.f32.gmra.mxu0 %v1383
        %v1596 = vpop.f32.mrf.mxu0
        %v1597 = vadd.f32 %v1532, %v1596
        %1598 = vmatmul.f32.gmra.mxu0 %v1387
        %v1599 = vpop.f32.mrf.mxu0
        %v1600 = vadd.f32 %v1535, %v1599
        %1601 = vmatmul.f32.gmra.mxu0 %v1391
        %v1602 = vpop.f32.mrf.mxu0
        %v1603 = vadd.f32 %v1538, %v1602
        %1604 = vmatmul.f32.gmra.mxu0 %v1395
        %v1605 = vpop.f32.mrf.mxu0
        %v1606 = vadd.f32 %v1541, %v1605
        %1607 = vmatmul.f32.gmra.mxu0 %v1399
        %v1608 = vpop.f32.mrf.mxu0
        %v1609 = vadd.f32 %v1544, %v1608
        %1610 = vmatmul.f32.gmra.mxu0 %v1403
        %v1611 = vpop.f32.mrf.mxu0
        %v1612 = vadd.f32 %v1547, %v1611
        %1613 = vmatmul.f32.gmra.mxu0 %v1407
        %v1614 = vpop.f32.mrf.mxu0
        %v1615 = vadd.f32 %v1550, %v1614
        %1616 = vmatmul.f32.gmra.mxu0 %v1411
        %v1617 = vpop.f32.mrf.mxu0
        %v1618 = vadd.f32 %v1553, %v1617
        %1619 = vmatmul.f32.gmra.mxu0 %v1415
        %v1620 = vpop.f32.mrf.mxu0
        %v1621 = vadd.f32 %v1556, %v1620
        %1622 = vmatmul.f32.gmra.mxu0 %v1419
        %v1623 = vpop.f32.mrf.mxu0
        %v1624 = vadd.f32 %v1559, %v1623
        %1625 = vmatmul.f32.gmra.mxu0 %v1423
        %v1626 = vpop.f32.mrf.mxu0
        %v1627 = vadd.f32 %v1562, %v1626
        %1628 = vmatmul.f32.gmra.mxu0 %v1427
        %v1629 = vpop.f32.mrf.mxu0
        %v1630 = vadd.f32 %v1565, %v1629
        %1631 = vmatmul.f32.gmra.mxu0 %v1431
        %v1632 = vpop.f32.mrf.mxu0
        %v1633 = vadd.f32 %v1568, %v1632
        %1634 = vmatmul.f32.gmra.mxu0 %v1435
        %v1635 = vpop.f32.mrf.mxu0
        %v1636 = vadd.f32 %v1571, %v1635
        %1637 = vmatmul.f32.gmra.mxu0 %v1439
        %v1638 = vpop.f32.mrf.mxu0
        %v1639 = vadd.f32 %v1574, %v1638
        %1640 = vmatmul.f32.gmra.mxu0 %v1443
        %v1641 = vpop.f32.mrf.mxu0
        %v1642 = vadd.f32 %v1577, %v1641
        %1643 = vdwg.mxu0
        %1644 = vmatpush.msra.mxu0 %v1493
        %1645 = vmatpush.msra.mxu0 %v1492
        %1646 = vmatpush.msra.mxu0 %v1491
        %1647 = vmatpush.msra.mxu0 %v1490
        %1648 = vmatpush.msra.mxu0 %v1489
        %1649 = vmatpush.msra.mxu0 %v1488
        %1650 = vmatpush.msra.mxu0 %v1487
        %1651 = vmatpush.msra.mxu0 %v1486
        %1652 = vmatpush.msra.mxu0 %v1485
        %1653 = vmatpush.msra.mxu0 %v1484
        %1654 = vmatpush.msra.mxu0 %v1483
        %1655 = vmatpush.msra.mxu0 %v1482
        %1656 = vmatpush.msra.mxu0 %v1481
        %1657 = vmatpush.msra.mxu0 %v1480
        %1658 = vmatpush.msra.mxu0 %v1479
        %1659 = vmatpush.msra.mxu0 %v1478
        %1660 = vmatmul.f32.gmra.mxu0 %v1384
        %v1661 = vpop.f32.mrf.mxu0
        %v1662 = vadd.f32 %v1597, %v1661
        %1663 = vmatmul.f32.gmra.mxu0 %v1388
        %v1664 = vpop.f32.mrf.mxu0
        %v1665 = vadd.f32 %v1600, %v1664
        %1666 = vmatmul.f32.gmra.mxu0 %v1392
        %v1667 = vpop.f32.mrf.mxu0
        %v1668 = vadd.f32 %v1603, %v1667
        %1669 = vmatmul.f32.gmra.mxu0 %v1396
        %v1670 = vpop.f32.mrf.mxu0
        %v1671 = vadd.f32 %v1606, %v1670
        %1672 = vmatmul.f32.gmra.mxu0 %v1400
        %v1673 = vpop.f32.mrf.mxu0
        %v1674 = vadd.f32 %v1609, %v1673
        %1675 = vmatmul.f32.gmra.mxu0 %v1404
        %v1676 = vpop.f32.mrf.mxu0
        %v1677 = vadd.f32 %v1612, %v1676
        %1678 = vmatmul.f32.gmra.mxu0 %v1408
        %v1679 = vpop.f32.mrf.mxu0
        %v1680 = vadd.f32 %v1615, %v1679
        %1681 = vmatmul.f32.gmra.mxu0 %v1412
        %v1682 = vpop.f32.mrf.mxu0
        %v1683 = vadd.f32 %v1618, %v1682
        %1684 = vmatmul.f32.gmra.mxu0 %v1416
        %v1685 = vpop.f32.mrf.mxu0
        %v1686 = vadd.f32 %v1621, %v1685
        %1687 = vmatmul.f32.gmra.mxu0 %v1420
        %v1688 = vpop.f32.mrf.mxu0
        %v1689 = vadd.f32 %v1624, %v1688
        %1690 = vmatmul.f32.gmra.mxu0 %v1424
        %v1691 = vpop.f32.mrf.mxu0
        %v1692 = vadd.f32 %v1627, %v1691
        %1693 = vmatmul.f32.gmra.mxu0 %v1428
        %v1694 = vpop.f32.mrf.mxu0
        %v1695 = vadd.f32 %v1630, %v1694
        %1696 = vmatmul.f32.gmra.mxu0 %v1432
        %v1697 = vpop.f32.mrf.mxu0
        %v1698 = vadd.f32 %v1633, %v1697
        %1699 = vmatmul.f32.gmra.mxu0 %v1436
        %v1700 = vpop.f32.mrf.mxu0
        %v1701 = vadd.f32 %v1636, %v1700
        %1702 = vmatmul.f32.gmra.mxu0 %v1440
        %v1703 = vpop.f32.mrf.mxu0
        %v1704 = vadd.f32 %v1639, %v1703
        %1705 = vmatmul.f32.gmra.mxu0 %v1444
        %v1706 = vpop.f32.mrf.mxu0
        %v1707 = vadd.f32 %v1642, %v1706
        %1708 = vdwg.mxu0
        %1709 = vmatpush.msra.mxu0 %v1509
        %1710 = vmatpush.msra.mxu0 %v1508
        %1711 = vmatpush.msra.mxu0 %v1507
        %1712 = vmatpush.msra.mxu0 %v1506
        %1713 = vmatpush.msra.mxu0 %v1505
        %1714 = vmatpush.msra.mxu0 %v1504
        %1715 = vmatpush.msra.mxu0 %v1503
        %1716 = vmatpush.msra.mxu0 %v1502
        %1717 = vmatpush.msra.mxu0 %v1501
        %1718 = vmatpush.msra.mxu0 %v1500
        %1719 = vmatpush.msra.mxu0 %v1499
        %1720 = vmatpush.msra.mxu0 %v1498
        %1721 = vmatpush.msra.mxu0 %v1497
        %1722 = vmatpush.msra.mxu0 %v1496
        %1723 = vmatpush.msra.mxu0 %v1495
        %1724 = vmatpush.msra.mxu0 %v1494
        %1725 = vmatmul.f32.gmra.mxu0 %v1385
        %v1726 = vpop.f32.mrf.mxu0
        %v1727 = vadd.f32 %v1662, %v1726
        %1728 = vmatmul.f32.gmra.mxu0 %v1389
        %v1729 = vpop.f32.mrf.mxu0
        %v1730 = vadd.f32 %v1665, %v1729
        %1731 = vmatmul.f32.gmra.mxu0 %v1393
        %v1732 = vpop.f32.mrf.mxu0
        %v1733 = vadd.f32 %v1668, %v1732
        %1734 = vmatmul.f32.gmra.mxu0 %v1397
        %v1735 = vpop.f32.mrf.mxu0
        %v1736 = vadd.f32 %v1671, %v1735
        %1737 = vmatmul.f32.gmra.mxu0 %v1401
        %v1738 = vpop.f32.mrf.mxu0
        %v1739 = vadd.f32 %v1674, %v1738
        %1740 = vmatmul.f32.gmra.mxu0 %v1405
        %v1741 = vpop.f32.mrf.mxu0
        %v1742 = vadd.f32 %v1677, %v1741
        %1743 = vmatmul.f32.gmra.mxu0 %v1409
        %v1744 = vpop.f32.mrf.mxu0
        %v1745 = vadd.f32 %v1680, %v1744
        %1746 = vmatmul.f32.gmra.mxu0 %v1413
        %v1747 = vpop.f32.mrf.mxu0
        %v1748 = vadd.f32 %v1683, %v1747
        %1749 = vmatmul.f32.gmra.mxu0 %v1417
        %v1750 = vpop.f32.mrf.mxu0
        %v1751 = vadd.f32 %v1686, %v1750
        %1752 = vmatmul.f32.gmra.mxu0 %v1421
        %v1753 = vpop.f32.mrf.mxu0
        %v1754 = vadd.f32 %v1689, %v1753
        %1755 = vmatmul.f32.gmra.mxu0 %v1425
        %v1756 = vpop.f32.mrf.mxu0
        %v1757 = vadd.f32 %v1692, %v1756
        %1758 = vmatmul.f32.gmra.mxu0 %v1429
        %v1759 = vpop.f32.mrf.mxu0
        %v1760 = vadd.f32 %v1695, %v1759
        %1761 = vmatmul.f32.gmra.mxu0 %v1433
        %v1762 = vpop.f32.mrf.mxu0
        %v1763 = vadd.f32 %v1698, %v1762
        %1764 = vmatmul.f32.gmra.mxu0 %v1437
        %v1765 = vpop.f32.mrf.mxu0
        %v1766 = vadd.f32 %v1701, %v1765
        %1767 = vmatmul.f32.gmra.mxu0 %v1441
        %v1768 = vpop.f32.mrf.mxu0
        %v1769 = vadd.f32 %v1704, %v1768
        %1770 = vmatmul.f32.gmra.mxu0 %v1445
        %v1771 = vpop.f32.mrf.mxu0
        %v1772 = vadd.f32 %v1707, %v1771
        %1773 = vdwg.mxu0
        %1774 = vst [vmem:[%s368] sm:$0xff] %v1727
        %1775 = vst [vmem:[%s368 + $0x8] sm:$0xff] %v1730
        %1776 = vst [vmem:[%s368 + $0x10] sm:$0xff] %v1733
        %1777 = vst [vmem:[%s368 + $0x18] sm:$0xff] %v1736
        %1778 = vst [vmem:[%s368 + $0x20] sm:$0xff] %v1739
        %1779 = vst [vmem:[%s368 + $0x28] sm:$0xff] %v1742
        %1780 = vst [vmem:[%s368 + $0x30] sm:$0xff] %v1745
        %1781 = vst [vmem:[%s368 + $0x38] sm:$0xff] %v1748
        %1782 = vst [vmem:[%s368 + $0x40] sm:$0xff] %v1751
        %1783 = vst [vmem:[%s368 + $0x48] sm:$0xff] %v1754
        %1784 = vst [vmem:[%s368 + $0x50] sm:$0xff] %v1757
        %1785 = vst [vmem:[%s368 + $0x58] sm:$0xff] %v1760
        %1786 = vst [vmem:[%s368 + $0x60] sm:$0xff] %v1763
        %1787 = vst [vmem:[%s368 + $0x68] sm:$0xff] %v1766
        %1788 = vst [vmem:[%s368 + $0x70] sm:$0xff] %v1769
        %1789 = vst [vmem:[%s368 + $0x78] sm:$0xff] %v1772
        %s1790 = smul.u32 16, %s22
        %p1791 = scmp.lt.s32.totalorder %s1790, 31
        %s1792 = scalar_select %p1791, %s1790, 31
        %s1793 = smul.addr %s1792, 8
        %s1794 = scalar_lea.vmem %s9, %s1793
        // Predicated region
        $region65: #{decoder_forward.1} parent=55 // pred_check
          %p1795 = pneg %p234
        $region66: #{decoder_forward.1} parent=55 // pred_check_branch
          %1797 = sbr.rel (%p1795) target = $region68
        $region67: #{decoder_forward.1} parent=55 // pred_region
          %s1798 = smul.u32 16, %s22
        $region68: #{decoder_forward.1} parent=55 // pred_fallthru
          _
      $region56: #{decoder_forward.1} parent=5 // pred_fallthru
        _
      %p1799 = scmp.le.s32.totalorder 2, %s17
      // Predicated region
      $region69: #{decoder_forward.1} parent=5 // pred_check
        %p1800 = pneg %p1799
      $region70: #{decoder_forward.1} parent=5 // pred_check_branch
        %1802 = sbr.rel (%p1800) target = $region72
      $region71: #{decoder_forward.1} parent=5 // pred_region
        %s1803 = ssub.s32 %s17, 2
        // Predicated region
        $region73: #{decoder_forward.1} parent=71 // pred_check
          %p1804 = pneg %p240
        $region74: #{decoder_forward.1} parent=71 // pred_check_branch
          %1806 = sbr.rel (%p1804) target = $region76
        $region75: #{decoder_forward.1} parent=71 // pred_region
          %s1807 = smul.u32 16, %s23
          %p1808 = scmp.lt.s32.totalorder %s1807, 31
          %s1809 = scalar_select %p1808, %s1807, 31
          %s1810 = smul.addr %s1809, 8
          %s1811 = scalar_lea.vmem %s9, %s1810
        $region76: #{decoder_forward.1} parent=71 // pred_fallthru
          _
      $region72: #{decoder_forward.1} parent=5 // pred_fallthru
        _
    $region6: #{decoder_forward.1} parent=1 // loop_footer
      %s21 = sadd.s32 1, %s17
    $region7: #{decoder_forward.1} parent=1 // loop_footer_branch
      %16 = sbr.rel target = $region3
    $region8: #{decoder_forward.1} parent=1 // loop_exit
      _
    %1812 = vsyncpa [#allocation3], 1
    %s1813 = scalar_lea.sflag [#allocation3], 1
    %1814 = vsyncpa %s1813, 1
    %1815 = vsyncpa [#allocation5], 1

</llo_original>
